<compile_context>
chip_gen: v6e
topology: v6e:2x2x1
jax: 0.10.0
libtpu: 0.0.40
codegen_flags: <defaults>
</compile_context>

<pallas_src>
import numpy as np
import jax
import jax.numpy as jnp
from jax.experimental import pallas as pl
from jax.experimental.pallas import tpu as pltpu

LRELU_SLOPE = 0.2
LANE = 128
VMEM_LIMIT = 48 * 1024 * 1024   # <= v7x 64 MiB physical; fine on v5e/v6e


def _round_up(x, m):
    return (x + m - 1) // m * m


def _pick_tk(kd):
    """kd is a multiple of 128; largest multiple of 128 <= 1152 dividing kd."""
    best = 128
    for c in range(1, min(kd, 1152) // 128 + 1):
        t = c * 128
        if kd % t == 0:
            best = t
    return best


def _pick_tm(m):
    if m >= 1024:
        return 512
    if m >= 256:
        return 256
    return _round_up(m, 8)


# ----------------------------------------------------------------------------
# Tiled GEMM kernel:
#   acc = residual (bf16->f32) or 0 at k==0
#   acc += patches @ W over k                   (learned 1x1 shortcut is folded
#                                                into the K reduction upstream)
#   epilogue: +bias, then write raw / lrelu / both, bf16, lane-dense.
# ----------------------------------------------------------------------------
def _make_gemm_kernel(has_res, out_mode, slope=LRELU_SLOPE):
    def kernel(*refs):
        i = 0
        p_ref = refs[i]; i += 1            # (tm, tk)  bf16 im2col patches
        w_ref = refs[i]; i += 1            # (tk, tn)  bf16 weight
        b_ref = refs[i]; i += 1            # (1,  tn)  f32 bias
        r_ref = None
        if has_res:
            r_ref = refs[i]; i += 1        # (tm, tn)  bf16 identity residual
        if out_mode == "both":
            o_raw = refs[i]; o_act = refs[i + 1]; i += 2
        else:
            o_ref = refs[i]; i += 1
        acc_ref = refs[i]                  # (tm, tn)  f32 scratch

        k = pl.program_id(2)

        @pl.when(k == 0)
        def _init():
            if has_res:
                acc_ref[...] = r_ref[...].astype(jnp.float32)
            else:
                acc_ref[...] = jnp.zeros_like(acc_ref)

        acc_ref[...] += jnp.dot(p_ref[...], w_ref[...],
                                preferred_element_type=jnp.float32)

        @pl.when(k == pl.num_programs(2) - 1)
        def _fin():
            res = acc_ref[...] + b_ref[...]
            if out_mode == "raw":
                o_ref[...] = res.astype(o_ref.dtype)
            elif out_mode == "act":
                act = jnp.where(res >= 0.0, res, slope * res)
                o_ref[...] = act.astype(o_ref.dtype)
            else:
                o_raw[...] = res.astype(o_raw.dtype)
                act = jnp.where(res >= 0.0, res, slope * res)
                o_act[...] = act.astype(o_act.dtype)

    return kernel


def gemm_conv(patches, w2d, bias, *, out_mode, residual=None,
              out_dtype=jnp.bfloat16):
    """patches: (M, Kd) bf16 (Kd <= Kdp); w2d: (Kdp, Coutp) bf16 (128-aligned);
    bias: (1, Coutp) f32; residual: optional (M, Coutp) bf16 (identity add)."""
    M, Kd = patches.shape
    Kdp, Coutp = w2d.shape
    assert Kdp % LANE == 0 and Coutp % LANE == 0 and Kd <= Kdp
    if Kd < Kdp:                                 # pad GEMM K dim once
        patches = jnp.pad(patches, ((0, 0), (0, Kdp - Kd)))

    tm = _pick_tm(M)
    tn = 256 if Coutp % 256 == 0 else 128
    tk = _pick_tk(Kdp)
    Mp = _round_up(M, tm)
    if Mp != M:
        patches = jnp.pad(patches, ((0, Mp - M), (0, 0)))

    gm, gn, gk = Mp // tm, Coutp // tn, Kdp // tk

    in_specs = [
        pl.BlockSpec((tm, tk), lambda m, n, k: (m, k)),
        pl.BlockSpec((tk, tn), lambda m, n, k: (k, n)),
        pl.BlockSpec((1, tn), lambda m, n, k: (0, n)),
    ]
    args = [patches, w2d, bias]
    if residual is not None:
        r = residual
        if Mp != M:
            r = jnp.pad(r, ((0, Mp - M), (0, 0)))
        in_specs.append(pl.BlockSpec((tm, tn), lambda m, n, k: (m, n)))
        args.append(r)

    if out_mode == "both":
        out_shape = (jax.ShapeDtypeStruct((Mp, Coutp), out_dtype),
                     jax.ShapeDtypeStruct((Mp, Coutp), out_dtype))
        out_specs = (pl.BlockSpec((tm, tn), lambda m, n, k: (m, n)),
                     pl.BlockSpec((tm, tn), lambda m, n, k: (m, n)))
    else:
        out_shape = jax.ShapeDtypeStruct((Mp, Coutp), out_dtype)
        out_specs = pl.BlockSpec((tm, tn), lambda m, n, k: (m, n))

    kernel = _make_gemm_kernel(residual is not None, out_mode)
    out = pl.pallas_call(
        kernel,
        out_shape=out_shape,
        grid=(gm, gn, gk),
        in_specs=in_specs,
        out_specs=out_specs,
        scratch_shapes=[pltpu.VMEM((tm, tn), jnp.float32)],
        compiler_params=pltpu.CompilerParams(
            dimension_semantics=("parallel", "parallel", "arbitrary"),
            vmem_limit_bytes=VMEM_LIMIT),
    )(*args)
    if out_mode == "both":
        return out[0][:M], out[1][:M]
    return out[:M]


# ----------------------------------------------------------------------------
# Classifier kernel: logits GEMM + fused per-row class gather (out[index, y]).
# ----------------------------------------------------------------------------
def _cls_kernel(p_ref, w_ref, b_ref, cls_ref, o_ref, acc_ref):
    k = pl.program_id(1)

    @pl.when(k == 0)
    def _init():
        acc_ref[...] = jnp.zeros_like(acc_ref)

    acc_ref[...] += jnp.dot(p_ref[...], w_ref[...],
                            preferred_element_type=jnp.float32)

    @pl.when(k == pl.num_programs(1) - 1)
    def _fin():
        logits = acc_ref[...] + b_ref[...]                      # (tm, Cp)
        lane = jax.lax.broadcasted_iota(jnp.int32, logits.shape, 1)
        sel = jnp.where(lane == cls_ref[...], logits, 0.0)
        o_ref[...] = jnp.sum(sel, axis=1, keepdims=True)


def classifier_select(patches, w2d, bias, cls_rows):
    """out1[m] = (patches @ w2d + bias)[m, cls_rows[m]]."""
    M, Kd = patches.shape
    Cp = w2d.shape[1]
    tm = _pick_tm(M)
    tk = _pick_tk(Kd)
    Mp = _round_up(M, tm)
    if Mp != M:
        # Padded rows get class 0 (garbage logits); they are sliced off below.
        patches = jnp.pad(patches, ((0, Mp - M), (0, 0)))
        cls_rows = jnp.pad(cls_rows, ((0, Mp - M), (0, 0)))
    gm, gk = Mp // tm, Kd // tk

    out = pl.pallas_call(
        _cls_kernel,
        out_shape=jax.ShapeDtypeStruct((Mp, 1), jnp.float32),
        grid=(gm, gk),
        in_specs=[
            pl.BlockSpec((tm, tk), lambda m, k: (m, k)),
            pl.BlockSpec((tk, Cp), lambda m, k: (k, 0)),
            pl.BlockSpec((1, Cp), lambda m, k: (0, 0)),
            pl.BlockSpec((tm, 1), lambda m, k: (m, 0)),
        ],
        out_specs=pl.BlockSpec((tm, 1), lambda m, k: (m, 0)),
        scratch_shapes=[pltpu.VMEM((tm, Cp), jnp.float32)],
        compiler_params=pltpu.CompilerParams(
            dimension_semantics=("parallel", "arbitrary"),
            vmem_limit_bytes=VMEM_LIMIT),
    )(patches, w2d, bias, cls_rows)
    return out[:M, 0]


# ----------------------------------------------------------------------------
# ReflectionPad2d(1) + AvgPool2d(3, stride=2), pure-VPU kernel, bf16 in/out.
# Emits raw pooled AND lrelu(pooled) (next block is activation-first).
# ----------------------------------------------------------------------------
def _pool_kernel(v_ref, o_raw_ref, o_act_ref):
    s = v_ref[0].astype(jnp.float32)
    for t in range(1, 9):
        s = s + v_ref[t].astype(jnp.float32)
    s = s * (1.0 / 9.0)
    o_raw_ref[...] = s.astype(o_raw_ref.dtype)
    a = jnp.where(s >= 0.0, s, LRELU_SLOPE * s)
    o_act_ref[...] = a.astype(o_act_ref.dtype)


def avg_pool_3x3_s2_refpad(x):
    """x: (N,H,W,Cp) bf16 -> (raw, lrelu(raw)) each (N,Ho,Wo,Cp) bf16."""
    N, H, W, C = x.shape
    xp = jnp.pad(x, ((0, 0), (1, 1), (1, 1), (0, 0)), mode="reflect")
    Ho = (H - 1) // 2 + 1
    Wo = (W - 1) // 2 + 1
    views = [xp[:, dy:dy + 2 * Ho - 1:2, dx:dx + 2 * Wo - 1:2, :]
             for dy in range(3) for dx in range(3)]
    v = jnp.stack(views, axis=0).reshape(9, N * Ho * Wo, C)     # bf16 stack

    R = N * Ho * Wo
    tr = 256 if R >= 256 else _round_up(R, 8)
    Rp = _round_up(R, tr)
    if Rp != R:
        v = jnp.pad(v, ((0, 0), (0, Rp - R), (0, 0)))

    raw, act = pl.pallas_call(
        _pool_kernel,
        out_shape=(jax.ShapeDtypeStruct((Rp, C), jnp.bfloat16),
                   jax.ShapeDtypeStruct((Rp, C), jnp.bfloat16)),
        grid=(Rp // tr,),
        in_specs=[pl.BlockSpec((9, tr, C), lambda i: (0, i, 0))],
        out_specs=(pl.BlockSpec((tr, C), lambda i: (i, 0)),
                   pl.BlockSpec((tr, C), lambda i: (i, 0))),
        compiler_params=pltpu.CompilerParams(
            dimension_semantics=("parallel",),
            vmem_limit_bytes=VMEM_LIMIT),
    )(v)
    return (raw[:R].reshape(N, Ho, Wo, C), act[:R].reshape(N, Ho, Wo, C))


# ----------------------------------------------------------------------------
# JAX glue: reflection pad + im2col on REAL channels (layout plumbing, bf16).
# ----------------------------------------------------------------------------
def _im2col(x, K, cin_real):
    # x: (N, Hp, Wp, C>=cin_real) -> (N*Ho*Wo, K*K*cin_real), stride 1
    N, Hp, Wp, _ = x.shape
    Ho, Wo = Hp - K + 1, Wp - K + 1
    cols = [x[:, dy:dy + Ho, dx:dx + Wo, :cin_real]
            for dy in range(K) for dx in range(K)]
    p = jnp.concatenate(cols, axis=-1)
    return p.reshape(N * Ho * Wo, K * K * cin_real), Ho, Wo


def conv3x3(x, w2d, bias, *, cin_real, out_mode, residual=None,
            shortcut_cols=None):
    """3x3 reflect-pad-1 conv as GEMM.  x is (N,H,W,Cp) bf16 (already activated
    when this conv is activation-first).  shortcut_cols appends the learned-1x1
    shortcut input as extra K columns (weight rows pre-stacked at build)."""
    N, H, W, _ = x.shape
    xin = jnp.pad(x, ((0, 0), (1, 1), (1, 1), (0, 0)), mode="reflect")
    patches, Ho, Wo = _im2col(xin, 3, cin_real)
    if shortcut_cols is not None:
        patches = jnp.concatenate([patches, shortcut_cols], axis=1)
    res = gemm_conv(patches, w2d, bias, out_mode=out_mode, residual=residual)
    coutp = w2d.shape[1]
    if out_mode == "both":
        return (res[0].reshape(N, Ho, Wo, coutp),
                res[1].reshape(N, Ho, Wo, coutp))
    return res.reshape(N, Ho, Wo, coutp)


# ----------------------------------------------------------------------------
# Parameter construction (deterministic, synthetic) + bf16 / pad prep.
# ----------------------------------------------------------------------------
def _conv_w(key, K, cin, cout):
    kw, kb = jax.random.split(key)
    w = jax.random.normal(kw, (K, K, cin, cout), jnp.float32) / np.sqrt(K * K * cin)
    b = 0.01 * jax.random.normal(kb, (cout,), jnp.float32)
    return w, b


def _pad2d(w, rows_p, cols_p):
    rows, cols = w.shape
    out = jnp.zeros((rows_p, cols_p), jnp.float32).at[:rows, :cols].set(w)
    return out.astype(jnp.bfloat16)


def _prep_b(b, cols_p):
    return jnp.zeros((1, cols_p), jnp.float32).at[0, :b.shape[0]].set(b)


def build_model(key, hp):
    assert hp["n_res_blks"] % 2 == 0
    n_layers = hp["n_res_blks"] // 2
    nf = hp["nf"]
    keys = iter(jax.random.split(key, 256))
    ops = []

    def conv_w_raw(K, cin, cout):
        w, b = _conv_w(next(keys), K, cin, cout)
        return w.reshape(K * K * cin, cout), b

    # cnn_f[0]: Conv2dBlock(3, nf, 3, 1, 1, reflect, norm=none, act=none, sn)
    w, b = conv_w_raw(3, 3, nf)
    ops.append(dict(kind="conv", cin=3,
                    w=_pad2d(w, _round_up(9 * 3, LANE), _round_up(nf, LANE)),
                    b=_prep_b(b, _round_up(nf, LANE))))

    def res_block(fin, fout, out_mode):
        fhid = min(fin, fout)
        fhid_p, fout_p = _round_up(fhid, LANE), _round_up(fout, LANE)
        w0, b0 = conv_w_raw(3, fin, fhid)
        w1, b1 = conv_w_raw(3, fhid, fout)
        learned = fin != fout
        if learned:
            ws, _ = _conv_w(next(keys), 1, fin, fout)     # conv_s: 1x1, no bias
            w1full = jnp.concatenate([w1, ws.reshape(fin, fout)], axis=0)
            w1p = _pad2d(w1full, _round_up(9 * fhid + fin, LANE), fout_p)
        else:
            w1p = _pad2d(w1, _round_up(9 * fhid, LANE), fout_p)
        return dict(kind="res", learned=learned, fin=fin, fhid=fhid, fout=fout,
                    w0=_pad2d(w0, _round_up(9 * fin, LANE), fhid_p),
                    b0=_prep_b(b0, fhid_p),
                    w1=w1p, b1=_prep_b(b1, fout_p), out_mode=out_mode)

    for _ in range(n_layers - 1):
        nf_out = int(np.min([nf * 2, 1024]))
        ops.append(res_block(nf, nf, "both"))
        ops.append(res_block(nf, nf_out, "raw"))    # followed by pool -> raw only
        ops.append(dict(kind="pool"))
        nf = nf_out
    nf_out = int(np.min([nf * 2, 1024]))
    ops.append(res_block(nf, nf, "both"))
    ops.append(res_block(nf, nf_out, "both"))       # feat (raw) + classifier (act)

    # cnn_c: Conv2dBlock(nf_out, num_classes, 1, 1, act='lrelu', act_first, sn)
    wc, bc = _conv_w(next(keys), 1, nf_out, hp["num_classes"])
    cf_p = _round_up(nf_out, LANE)
    ncls_p = _round_up(hp["num_classes"], LANE)
    cls = dict(w=_pad2d(wc.reshape(nf_out, hp["num_classes"]), cf_p, ncls_p),
               b=_prep_b(bc, ncls_p))
    return ops, cls, dict(feat_channels=nf_out)


# ----------------------------------------------------------------------------
# Forward pass (matches GPPatchMcResDis.forward).
# ----------------------------------------------------------------------------
def forward(ops, cls, meta, x_nchw, y):
    raw = jnp.transpose(x_nchw, (0, 2, 3, 1)).astype(jnp.bfloat16)  # NHWC bf16
    act = None

    for op in ops:
        if op["kind"] == "conv":
            # stem: no activation on its output; emit raw + lrelu(raw) for the
            # next (activation-first) res block.
            raw, act = conv3x3(raw, op["w"], op["b"], cin_real=op["cin"],
                               out_mode="both")
        elif op["kind"] == "res":                     # ActFirstResBlock
            N, H, W, cp = raw.shape
            M = N * H * W
            # conv_0: act-first lrelu already fused into the producer; fuse the
            # next lrelu (conv_1's act-first) into conv_0's epilogue.
            h_act = conv3x3(act, op["w0"], op["b0"], cin_real=op["fin"],
                            out_mode="act")
            if op["learned"]:
                # learned 1x1 shortcut folded into the K reduction: append the
                # (un-activated) shortcut input columns; conv_s weight rows are
                # stacked under w1 at build time.
                sc_cols = raw.reshape(M, cp)[:, :op["fin"]]
                res = conv3x3(h_act, op["w1"], op["b1"], cin_real=op["fhid"],
                              out_mode=op["out_mode"], shortcut_cols=sc_cols)
            else:
                # identity shortcut fused into the accumulator init (bf16 read).
                res = conv3x3(h_act, op["w1"], op["b1"], cin_real=op["fhid"],
                              out_mode=op["out_mode"],
                              residual=raw.reshape(M, cp))
            if op["out_mode"] == "both":
                raw, act = res
            else:
                raw, act = res, None                  # next op is the pool
        elif op["kind"] == "pool":       # ReflectionPad2d(1)+AvgPool2d(3,2)
            raw, act = avg_pool_3x3_s2_refpad(raw)

    feat = raw                                        # (N, Hf, Wf, Cf_p) bf16
    N, Hf, Wf, cf_p = feat.shape

    # cnn_c (act-first lrelu == `act`) + fused class gather out[index, y, :, :]
    patches = act.reshape(N * Hf * Wf, cf_p)
    cls_rows = jnp.repeat(y.astype(jnp.int32), Hf * Wf).reshape(N * Hf * Wf, 1)
    out1 = classifier_select(patches, cls["w"], cls["b"], cls_rows)
    out1 = out1.reshape(N, Hf, Wf)

    feat_nchw = jnp.transpose(feat[..., :meta["feat_channels"]],
                              (0, 3, 1, 2)).astype(jnp.float32)
    return out1, feat_nchw


# ----------------------------------------------------------------------------
if __name__ == "__main__":
    hp = {"nf": 8, "n_res_blks": 4, "num_classes": 4}

    key = jax.random.PRNGKey(0)
    k_param, k_x, k_y = jax.random.split(key, 3)

    ops, cls, meta = build_model(k_param, hp)

    # PyTorch-convention NCHW input (3 channels, as the module's stem expects).
    x = jax.random.normal(k_x, (2, 3, 16, 16), jnp.float32)
    y = jax.random.randint(k_y, (2,), 0, hp["num_classes"])

    out1, feat = forward(ops, cls, meta, x, y)
    out1 = jax.block_until_ready(out1)
    feat = jax.block_until_ready(feat)

    assert out1.shape == (2, 8, 8), out1.shape
    assert feat.shape == (2, 32, 8, 8), feat.shape
    assert jnp.all(jnp.isfinite(out1)) and jnp.all(jnp.isfinite(feat))
    print("KERNEL_OK")
</pallas_src>

<mosaic_0001>
module attributes {stable_mosaic.version = 11 : i64} {
  func.func @kernel(%arg0: i32, %arg1: i32, %arg2: i32, %arg3: memref<256x128xbf16, #tpu.memory_space<vmem>>, %arg4: memref<128x128xbf16, #tpu.memory_space<vmem>>, %arg5: memref<1x128xf32, #tpu.memory_space<vmem>>, %arg6: memref<256x128xbf16, #tpu.memory_space<vmem>>, %arg7: memref<256x128xbf16, #tpu.memory_space<vmem>>, %arg8: memref<256x128xf32, #tpu.memory_space<vmem>>) attributes {dimension_semantics = [#tpu.dimension_semantics<parallel>, #tpu.dimension_semantics<parallel>, #tpu.dimension_semantics<arbitrary>], iteration_bounds = array<i64: 2, 1, 1>, scalar_prefetch = 0 : i64, scratch_operands = 1 : i64, tpu.core_type = #tpu.core_type<tc>, window_params = [{transform_indices = @transform_0, window_bounds = array<i64: 256, 128>}, {transform_indices = @transform_1, window_bounds = array<i64: 128, 128>}, {transform_indices = @transform_2, window_bounds = array<i64: 1, 128>}, {transform_indices = @transform_3, window_bounds = array<i64: 256, 128>}, {transform_indices = @transform_4, window_bounds = array<i64: 256, 128>}]} {
    %c0_i32 = arith.constant 0 : i32
    %0 = arith.cmpi eq, %arg2, %c0_i32 : i32
    %1 = arith.extui %0 : i1 to i32
    %c0_i32_0 = arith.constant 0 : i32
    %2 = arith.cmpi ne, %1, %c0_i32_0 : i32
    scf.if %2 {
      %cst_10 = arith.constant 0.000000e+00 : f32
      %12 = vector.broadcast %cst_10 : f32 to vector<256x128xf32>
      %c0_11 = arith.constant 0 : index
      %c0_12 = arith.constant 0 : index
      %13 = vector.load %arg8[%c0_11, %c0_12] : memref<256x128xf32, #tpu.memory_space<vmem>>, vector<256x128xf32>
      tpu.vector_store %arg8[%c0_11, %c0_12], %12 {strides = array<i32>} : memref<256x128xf32, #tpu.memory_space<vmem>>, vector<256x128xf32>,
    } else {
    }
    %c0 = arith.constant 0 : index
    %c0_1 = arith.constant 0 : index
    %3 = vector.load %arg8[%c0, %c0_1] : memref<256x128xf32, #tpu.memory_space<vmem>>, vector<256x128xf32>
    %c0_2 = arith.constant 0 : index
    %c0_3 = arith.constant 0 : index
    %4 = vector.load %arg3[%c0_2, %c0_3] : memref<256x128xbf16, #tpu.memory_space<vmem>>, vector<256x128xbf16>
    %c0_4 = arith.constant 0 : index
    %c0_5 = arith.constant 0 : index
    %5 = vector.load %arg4[%c0_4, %c0_5] : memref<128x128xbf16, #tpu.memory_space<vmem>>, vector<128x128xbf16>
    %cst = arith.constant dense<0.000000e+00> : vector<256x128xf32>
    %6 = tpu.matmul %4, %5, %cst {dimension_numbers = #tpu.dot_dimension_numbers<[1], [0], [0], [1], [0, 0, 1, 1], [], []>} : vector<256x128xbf16>, vector<128x128xbf16>, vector<256x128xf32> -> vector<256x128xf32>
    %7 = arith.addf %3, %6 : vector<256x128xf32>
    %c0_6 = arith.constant 0 : index
    %c0_7 = arith.constant 0 : index
    %8 = vector.load %arg8[%c0_6, %c0_7] : memref<256x128xf32, #tpu.memory_space<vmem>>, vector<256x128xf32>
    tpu.vector_store %arg8[%c0_6, %c0_7], %7 {strides = array<i32>} : memref<256x128xf32, #tpu.memory_space<vmem>>, vector<256x128xf32>,
    %c0_i32_8 = arith.constant 0 : i32
    %9 = arith.cmpi eq, %arg2, %c0_i32_8 : i32
    %10 = arith.extui %9 : i1 to i32
    %c0_i32_9 = arith.constant 0 : i32
    %11 = arith.cmpi ne, %10, %c0_i32_9 : i32
    scf.if %11 {
      %c0_10 = arith.constant 0 : index
      %c0_11 = arith.constant 0 : index
      %12 = vector.load %arg8[%c0_10, %c0_11] : memref<256x128xf32, #tpu.memory_space<vmem>>, vector<256x128xf32>
      %c0_12 = arith.constant 0 : index
      %c0_13 = arith.constant 0 : index
      %13 = vector.load %arg5[%c0_12, %c0_13] : memref<1x128xf32, #tpu.memory_space<vmem>>, vector<1x128xf32>
      %14 = vector.broadcast %13 : vector<1x128xf32> to vector<256x128xf32>
      %15 = arith.addf %12, %14 : vector<256x128xf32>
      %16 = arith.truncf %15 : vector<256x128xf32> to vector<256x128xbf16>
      %c0_14 = arith.constant 0 : index
      %c0_15 = arith.constant 0 : index
      %17 = vector.load %arg6[%c0_14, %c0_15] : memref<256x128xbf16, #tpu.memory_space<vmem>>, vector<256x128xbf16>
      tpu.vector_store %arg6[%c0_14, %c0_15], %16 {strides = array<i32>} : memref<256x128xbf16, #tpu.memory_space<vmem>>, vector<256x128xbf16>,
      %cst_16 = arith.constant 0.000000e+00 : f32
      %18 = vector.broadcast %cst_16 : f32 to vector<256x128xf32>
      %19 = arith.cmpf oge, %15, %18 : vector<256x128xf32>
      %cst_17 = arith.constant 2.000000e-01 : f32
      %20 = vector.broadcast %cst_17 : f32 to vector<256x128xf32>
      %21 = arith.mulf %20, %15 : vector<256x128xf32>
      %22 = arith.select %19, %15, %21 : vector<256x128xi1>, vector<256x128xf32>
      %23 = arith.truncf %22 : vector<256x128xf32> to vector<256x128xbf16>
      %c0_18 = arith.constant 0 : index
      %c0_19 = arith.constant 0 : index
      %24 = vector.load %arg7[%c0_18, %c0_19] : memref<256x128xbf16, #tpu.memory_space<vmem>>, vector<256x128xbf16>
      tpu.vector_store %arg7[%c0_18, %c0_19], %23 {strides = array<i32>} : memref<256x128xbf16, #tpu.memory_space<vmem>>, vector<256x128xbf16>,
    } else {
    }
    return
  }
  func.func @transform_0(%arg0: i32, %arg1: i32, %arg2: i32) -> (i32, i32) {
    %c0_i32 = arith.constant 0 : i32
    return %arg0, %arg2 : i32, i32
  }
  func.func @transform_1(%arg0: i32, %arg1: i32, %arg2: i32) -> (i32, i32) {
    %c0_i32 = arith.constant 0 : i32
    return %arg2, %arg1 : i32, i32
  }
  func.func @transform_2(%arg0: i32, %arg1: i32, %arg2: i32) -> (i32, i32) {
    %c0_i32 = arith.constant 0 : i32
    %c0_i32_0 = arith.constant 0 : i32
    return %c0_i32, %arg1 : i32, i32
  }
  func.func @transform_3(%arg0: i32, %arg1: i32, %arg2: i32) -> (i32, i32) {
    %c0_i32 = arith.constant 0 : i32
    return %arg0, %arg1 : i32, i32
  }
  func.func @transform_4(%arg0: i32, %arg1: i32, %arg2: i32) -> (i32, i32) {
    %c0_i32 = arith.constant 0 : i32
    return %arg0, %arg1 : i32, i32
  }
}

</mosaic_0001>

<llo_original>
// kernel: tpu_custom_call.1
$region0: #{tpu_custom_call.1}
  #allocation0 [shape = 'u32[]', space=smem, size = 0x4, offset = 0x4, fixed_abs, tag = 'smem constant byte address 0x4 - core index']
  #allocation1 [shape = 'u32[144,128]{1,0:T(1,128)}', space=vmem, size = 0x12000, scoped, tag = 'internal scratch']
  #allocation2 [shape = 'f32[256,128]{1,0:T(8,128)}', space=vmem, size = 0x20000, scoped, tag = 'scratch operand']
  %s0 = inlined_call_operand.hbm [shape: bf16[512,128], index: 0, kind: input, shape index: {}]
  %s1 = inlined_call_operand.hbm [shape: bf16[128,128], index: 1, kind: input, shape index: {}]
  %s2 = inlined_call_operand.vmem [shape: f32[1,128], index: 2, kind: input, shape index: {}]
  %s3 = inlined_call_operand.hbm [shape: bf16[512,128], index: 3, kind: output, shape index: {0}]
  %s4 = inlined_call_operand.hbm [shape: bf16[512,128], index: 4, kind: output, shape index: {1}]
  %5 = xla_tuple %s3, %s4
  %s6 = sld [smem:[#allocation0]]
  $region69: #{tpu_custom_call.1} parent=0
    _
  %s8 = ssub.s32 1, %s6
  %s9 = scalar_select 0, %s8, %s6
  $region1: #{tpu_custom_call.1} parent=0
    #allocation3 [shape = 'u8[131072]{0}', space=vmem, size = 0x20000, scoped, tag = 'input window, operand 0']
    #allocation4 [shape = 's32[2]{0}', space=sflag, size = 0x8, scoped, tag = 'scoped memory for tpu_custom_call.1']
    #allocation5 [shape = 's32[2]{0}', space=sflag, size = 0x8, scoped, tag = 'scoped memory for tpu_custom_call.1']
    #allocation6 [shape = 'u8[32768]{0}', space=vmem, size = 0x8000, scoped, tag = 'input window, operand 1, single buffered']
    #allocation7 [shape = 's32[1]{0}', space=sflag, size = 0x4, scoped, tag = 'scoped memory for tpu_custom_call.1']
    #allocation8 [shape = 'u8[131072]{0}', space=vmem, size = 0x20000, scoped, tag = 'output window, operand 0']
    #allocation9 [shape = 'u8[131072]{0}', space=vmem, size = 0x20000, scoped, tag = 'output window, operand 1']
    #allocation10 [shape = 's32[2]{0}', space=sflag, size = 0x8, scoped, tag = 'scoped memory for tpu_custom_call.1']
    %10 = vsyncpa [#allocation4], 0
    %s11 = scalar_lea.sflag [#allocation4], 1
    %12 = vsyncpa %s11, 0
    %13 = vsyncpa [#allocation7], 0
    %14 = vsyncpa [#allocation5], 0
    %s15 = scalar_lea.sflag [#allocation5], 1
    %16 = vsyncpa %s15, 0
    %17 = vsyncpa [#allocation10], 0
    %s18 = scalar_lea.sflag [#allocation10], 1
    %19 = vsyncpa %s18, 0
    loop: start=0, step=1, limit=4
    $region2: #{tpu_custom_call.1} parent=1 // loop_pre_header
      _
    $region3: #{tpu_custom_call.1} parent=1 // loop_header
      %s21 = sphi 0, %s25
      %p22 = scmp.ge.s32.totalorder %s21, 4
      %s28 = sphi 0, %s47
      %s29 = sphi 0, %s43
      %s30 = sphi 0, %s39
      %s31 = sphi 0, %s28
      %s32 = sphi 0, %s29
      %s33 = sphi 0, %s30
      %s34 = sphi 0, %s31
      %s35 = sphi 0, %s32
      %s36 = sphi 0, %s33
      %s52 = sphi 0, %s54
      %s55 = sphi 0, %s52
      %s56 = sphi 0, %s55
      %s72 = sphi 0, %s56
      %s80 = sphi 0, %s82
      %s83 = sphi 0, %s80
      %s84 = sphi 0, %s83
      %s100 = sphi 0, %s84
      %s106 = sphi 0, %s108
      %s109 = sphi 0, %s106
      %s110 = sphi 0, %s109
      %s126 = sphi 0, %s110
      %s134 = sphi 0, %s136
      %s137 = sphi 0, %s134
      %s138 = sphi 0, %s137
      %s154 = sphi 0, %s138
      %s162 = sphi 0, %s164
      %s165 = sphi 0, %s162
      %s166 = sphi 0, %s165
      %s182 = sphi 0, %s166
    $region4: #{tpu_custom_call.1} parent=1 // loop_header_branch
      %24 = sbr.rel (%p22) target = $region8
    $region5: #{tpu_custom_call.1} parent=1 // loop_body
      %s26 = ssub.s32 %s21, 1
      %s27 = ssub.s32 %s21, 2
      %s37 = sadd.s32 1, %s30
      %p38 = scmp.ge.s32.totalorder %s37, 1
      %s39 = scalar_select %p38, 0, %s37
      %s40 = sadd.s32 1, %s29
      %s41 = scalar_select %p38, %s40, %s29
      %p42 = scmp.ge.s32.totalorder %s41, 1
      %s43 = scalar_select %p42, 0, %s41
      %s44 = sadd.s32 1, %s28
      %s45 = scalar_select %p42, %s44, %s28
      %p46 = scmp.ge.s32.totalorder %s45, 2
      %s47 = scalar_select %p46, 0, %s45
      %s48 = ssub.s32 %s28, %s47
      %s49 = ssub.s32 %s30, %s39
      %s50 = sor.u32 %s48, %s49
      %p51 = scmp.eq.s32.totalorder %s50, 0
      %s53 = sadd.s32 %s52, 1
      %s54 = scalar_select %p51, %s52, %s53
      %p57 = pneg %p51
      %p58 = scmp.eq.s32.totalorder %s21, 1
      %p59 = por %p57, %p58
      %p60 = scmp.ne.s32.totalorder %s52, %s55
      %p61 = scmp.eq.s32.totalorder %s21, 0
      %p62 = por %p60, %p61
      %p63 = scmp.ne.s32.totalorder %s52, %s55
      %p64 = scmp.eq.s32.totalorder %s26, 1
      %p65 = por %p63, %p64
      %p66 = scmp.ne.s32.totalorder %s55, %s56
      %p67 = scmp.eq.s32.totalorder %s26, 0
      %p68 = por %p66, %p67
      %p69 = scmp.ne.s32.totalorder %s55, %s56
      %p70 = scmp.eq.s32.totalorder %s27, 1
      %p71 = por %p69, %p70
      %p73 = scmp.ne.s32.totalorder %s56, %s72
      %p74 = scmp.eq.s32.totalorder %s27, 0
      %p75 = por %p73, %p74
      %s76 = ssub.s32 %s30, %s39
      %s77 = ssub.s32 %s29, %s43
      %s78 = sor.u32 %s76, %s77
      %p79 = scmp.eq.s32.totalorder %s78, 0
      %s81 = sadd.s32 %s80, 1
      %s82 = scalar_select %p79, %s80, %s81
      %p85 = pneg %p79
      %p86 = scmp.eq.s32.totalorder %s21, 1
      %p87 = por %p85, %p86
      %p88 = scmp.ne.s32.totalorder %s80, %s83
      %p89 = scmp.eq.s32.totalorder %s21, 0
      %p90 = por %p88, %p89
      %p91 = scmp.ne.s32.totalorder %s80, %s83
      %p92 = scmp.eq.s32.totalorder %s26, 1
      %p93 = por %p91, %p92
      %p94 = scmp.ne.s32.totalorder %s83, %s84
      %p95 = scmp.eq.s32.totalorder %s26, 0
      %p96 = por %p94, %p95
      %p97 = scmp.ne.s32.totalorder %s83, %s84
      %p98 = scmp.eq.s32.totalorder %s27, 1
      %p99 = por %p97, %p98
      %p101 = scmp.ne.s32.totalorder %s84, %s100
      %p102 = scmp.eq.s32.totalorder %s27, 0
      %p103 = por %p101, %p102
      %s104 = ssub.s32 %s29, %s43
      %p105 = scmp.eq.s32.totalorder %s104, 0
      %s107 = sadd.s32 %s106, 1
      %s108 = scalar_select %p105, %s106, %s107
      %p111 = pneg %p105
      %p112 = scmp.eq.s32.totalorder %s21, 1
      %p113 = por %p111, %p112
      %p114 = scmp.ne.s32.totalorder %s106, %s109
      %p115 = scmp.eq.s32.totalorder %s21, 0
      %p116 = por %p114, %p115
      %p117 = scmp.ne.s32.totalorder %s106, %s109
      %p118 = scmp.eq.s32.totalorder %s26, 1
      %p119 = por %p117, %p118
      %p120 = scmp.ne.s32.totalorder %s109, %s110
      %p121 = scmp.eq.s32.totalorder %s26, 0
      %p122 = por %p120, %p121
      %p123 = scmp.ne.s32.totalorder %s109, %s110
      %p124 = scmp.eq.s32.totalorder %s27, 1
      %p125 = por %p123, %p124
      %p127 = scmp.ne.s32.totalorder %s110, %s126
      %p128 = scmp.eq.s32.totalorder %s27, 0
      %p129 = por %p127, %p128
      %s130 = ssub.s32 %s28, %s47
      %s131 = ssub.s32 %s29, %s43
      %s132 = sor.u32 %s130, %s131
      %p133 = scmp.eq.s32.totalorder %s132, 0
      %s135 = sadd.s32 %s134, 1
      %s136 = scalar_select %p133, %s134, %s135
      %p139 = pneg %p133
      %p140 = scmp.eq.s32.totalorder %s21, 1
      %p141 = por %p139, %p140
      %p142 = scmp.ne.s32.totalorder %s134, %s137
      %p143 = scmp.eq.s32.totalorder %s21, 0
      %p144 = por %p142, %p143
      %p145 = scmp.ne.s32.totalorder %s134, %s137
      %p146 = scmp.eq.s32.totalorder %s26, 1
      %p147 = por %p145, %p146
      %p148 = scmp.ne.s32.totalorder %s137, %s138
      %p149 = scmp.eq.s32.totalorder %s26, 0
      %p150 = por %p148, %p149
      %p151 = scmp.ne.s32.totalorder %s137, %s138
      %p152 = scmp.eq.s32.totalorder %s27, 1
      %p153 = por %p151, %p152
      %p155 = scmp.ne.s32.totalorder %s138, %s154
      %p156 = scmp.eq.s32.totalorder %s27, 0
      %p157 = por %p155, %p156
      %s158 = ssub.s32 %s28, %s47
      %s159 = ssub.s32 %s29, %s43
      %s160 = sor.u32 %s158, %s159
      %p161 = scmp.eq.s32.totalorder %s160, 0
      %s163 = sadd.s32 %s162, 1
      %s164 = scalar_select %p161, %s162, %s163
      %p167 = pneg %p161
      %p168 = scmp.eq.s32.totalorder %s21, 1
      %p169 = por %p167, %p168
      %p170 = scmp.ne.s32.totalorder %s162, %s165
      %p171 = scmp.eq.s32.totalorder %s21, 0
      %p172 = por %p170, %p171
      %p173 = scmp.ne.s32.totalorder %s162, %s165
      %p174 = scmp.eq.s32.totalorder %s26, 1
      %p175 = por %p173, %p174
      %p176 = scmp.ne.s32.totalorder %s165, %s166
      %p177 = scmp.eq.s32.totalorder %s26, 0
      %p178 = por %p176, %p177
      %p179 = scmp.ne.s32.totalorder %s165, %s166
      %p180 = scmp.eq.s32.totalorder %s27, 1
      %p181 = por %p179, %p180
      %p183 = scmp.ne.s32.totalorder %s166, %s182
      %p184 = scmp.eq.s32.totalorder %s27, 0
      %p185 = por %p183, %p184
      %p186 = scmp.le.s32.totalorder 1, %s21
      %p187 = scmp.lt.s32.totalorder %s21, 3
      %p188 = pnand %p186, %p187
      %p189 = pneg %p188
      // Predicated region
      $region9: #{tpu_custom_call.1} parent=5 // pred_check
        _
      $region10: #{tpu_custom_call.1} parent=5 // pred_check_branch
        %191 = sbr.rel (%p188) target = $region12
      $region11: #{tpu_custom_call.1} parent=5 // pred_region
        %s192 = ssub.s32 %s21, 1
        // Predicated region
        $region13: #{tpu_custom_call.1} parent=11 // pred_check
          %p193 = pneg %p96
        $region14: #{tpu_custom_call.1} parent=11 // pred_check_branch
          %195 = sbr.rel (%p193) target = $region16
        $region15: #{tpu_custom_call.1} parent=11 // pred_region
          %s196 = smul.u32 16, %s33
          %s198 = ssub.s32 1024, 1024
          %199 = vsyncadd [#allocation7], %s198
          %s200 = sadd.s32 %s32, %s196
          %s201 = smul.addr %s200, 64
          %s202 = scalar_lea.hbm %s1, %s201
          %s203 = sshll.u32 [#allocation6], 4
          %s204 = int_to_ptr.vmem [resolvable:$true] %s203
          %209 = dma.hbm_to_vmem [thread:$0]  %s202, 1024, %s204, [#allocation7], 64, 64, 4
        $region16: #{tpu_custom_call.1} parent=11 // pred_fallthru
          _
        // Predicated region
        $region17: #{tpu_custom_call.1} parent=11 // pred_check
          %p210 = pneg %p122
        $region18: #{tpu_custom_call.1} parent=11 // pred_check_branch
          %212 = sbr.rel (%p210) target = $region20
        $region19: #{tpu_custom_call.1} parent=11 // pred_region
          %p213 = scmp.lt.s32.totalorder %s32, 0
          %s214 = scalar_select %p213, %s32, 0
          %s215 = scalar_lea.vmem %s2, %s214
        $region20: #{tpu_custom_call.1} parent=11 // pred_fallthru
          _
      $region12: #{tpu_custom_call.1} parent=5 // pred_fallthru
        _
      %p216 = scmp.lt.s32.totalorder %s21, 2
      // Predicated region
      $region21: #{tpu_custom_call.1} parent=5 // pred_check
        %p217 = pneg %p216
      $region22: #{tpu_custom_call.1} parent=5 // pred_check_branch
        %219 = sbr.rel (%p217) target = $region24
      $region23: #{tpu_custom_call.1} parent=5 // pred_region
        // Predicated region
        $region25: #{tpu_custom_call.1} parent=23 // pred_check
          %p220 = pneg %p62
        $region26: #{tpu_custom_call.1} parent=23 // pred_check_branch
          %222 = sbr.rel (%p220) target = $region28
        $region27: #{tpu_custom_call.1} parent=23 // pred_region
          %s223 = sand.u32 %s52, 1
          %s224 = scalar_lea.sflag [#allocation4], %s223
          %s225 = sand.u32 %s52, 1
          %s226 = smul.addr %s225, 128
          %s227 = scalar_lea.vmem [#allocation3], %s226
          %s228 = smul.u32 32, %s28
          %s230 = ssub.s32 2048, 2048
          %231 = vsyncadd %s224, %s230
          %s232 = sadd.s32 %s30, %s228
          %s233 = smul.addr %s232, 64
          %s234 = scalar_lea.hbm %s0, %s233
          %s235 = sshll.u32 %s227, 4
          %s236 = int_to_ptr.vmem [resolvable:$true] %s235
          %241 = dma.hbm_to_vmem [thread:$0]  %s234, 2048, %s236, %s224, 64, 64, 4
        $region28: #{tpu_custom_call.1} parent=23 // pred_fallthru
          _
      $region24: #{tpu_custom_call.1} parent=5 // pred_fallthru
        _
      %p242 = scmp.le.s32.totalorder 1, %s21
      %p243 = scmp.lt.s32.totalorder %s21, 3
      %p244 = pnand %p242, %p243
      %p245 = pneg %p244
      // Predicated region
      $region29: #{tpu_custom_call.1} parent=5 // pred_check
        _
      $region30: #{tpu_custom_call.1} parent=5 // pred_check_branch
        %247 = sbr.rel (%p244) target = $region32
      $region31: #{tpu_custom_call.1} parent=5 // pred_region
        %s248 = ssub.s32 %s21, 1
        %s249 = sand.u32 %s55, 1
        %s250 = scalar_lea.sflag [#allocation4], %s249
        %s251 = sand.u32 %s55, 1
        %s252 = smul.addr %s251, 128
        %s253 = scalar_lea.vmem [#allocation3], %s252
        // Predicated region
        $region33: #{tpu_custom_call.1} parent=31 // pred_check
          %p254 = pneg %p68
        $region34: #{tpu_custom_call.1} parent=31 // pred_check_branch
          %256 = sbr.rel (%p254) target = $region36
        $region35: #{tpu_custom_call.1} parent=31 // pred_region
          %257 = dma.done %s250, 2048
        $region36: #{tpu_custom_call.1} parent=31 // pred_fallthru
          _
        // Predicated region
        $region37: #{tpu_custom_call.1} parent=31 // pred_check
          %p258 = pneg %p96
        $region38: #{tpu_custom_call.1} parent=31 // pred_check_branch
          %260 = sbr.rel (%p258) target = $region40
        $region39: #{tpu_custom_call.1} parent=31 // pred_region
          %261 = dma.done [#allocation7], 1024
        $region40: #{tpu_custom_call.1} parent=31 // pred_fallthru
          _
        %s262 = sand.u32 %s55, 1
        %s263 = scalar_lea.sflag [#allocation4], %s262
        %s264 = sand.u32 %s55, 1
        %s265 = smul.addr %s264, 128
        %s266 = scalar_lea.vmem [#allocation3], %s265
        %p267 = pneg %p68
        %p268 = pneg %p65
        %p269 = pneg %p96
        %p270 = pneg %p93
        %p271 = scmp.lt.s32.totalorder %s32, 0
        %s272 = scalar_select %p271, %s32, 0
        %s273 = scalar_lea.vmem %s2, %s272
        %p274 = pneg %p122
        %p275 = pneg %p119
        %p276 = pneg %p150
        %p277 = pneg %p147
        %s278 = sand.u32 %s137, 1
        %s279 = scalar_lea.sflag [#allocation5], %s278
        %s280 = sand.u32 %s137, 1
        %s281 = smul.addr %s280, 128
        %s282 = scalar_lea.vmem [#allocation8], %s281
        %p283 = pneg %p178
        %p284 = pneg %p175
        %s285 = sand.u32 %s165, 1
        %s286 = scalar_lea.sflag [#allocation10], %s285
        %s287 = sand.u32 %s165, 1
        %s288 = smul.addr %s287, 128
        %s289 = scalar_lea.vmem [#allocation9], %s288
        %s290 = smul.u32 32, %s31
        %s291 = smul.u32 16, %s33
        %p292 = scmp.lt.s32.totalorder %s32, 0
        %s293 = scalar_select %p292, %s32, 0
        %s294 = scalar_lea.vmem %s2, %s293
        %s295 = smul.u32 32, %s31
        %s296 = smul.u32 32, %s31
        %p298 = scmp.eq.s32.totalorder %s33, 0
        // Predicated region
        $region41: #{tpu_custom_call.1} parent=31 // pred_check
          %p299 = pneg %p298
        $region42: #{tpu_custom_call.1} parent=31 // pred_check_branch
          %301 = sbr.rel (%p299) target = $region44
        $region43: #{tpu_custom_call.1} parent=31 // pred_region
          %302 = vst [vmem:[#allocation2] sm:$0xff] 0.0
          %303 = vst [vmem:[#allocation2 + $0x8] sm:$0xff] 0.0
          %304 = vst [vmem:[#allocation2 + $0x10] sm:$0xff] 0.0
          %305 = vst [vmem:[#allocation2 + $0x18] sm:$0xff] 0.0
          %306 = vst [vmem:[#allocation2 + $0x20] sm:$0xff] 0.0
          %307 = vst [vmem:[#allocation2 + $0x28] sm:$0xff] 0.0
          %308 = vst [vmem:[#allocation2 + $0x30] sm:$0xff] 0.0
          %309 = vst [vmem:[#allocation2 + $0x38] sm:$0xff] 0.0
          %310 = vst [vmem:[#allocation2 + $0x40] sm:$0xff] 0.0
          %311 = vst [vmem:[#allocation2 + $0x48] sm:$0xff] 0.0
          %312 = vst [vmem:[#allocation2 + $0x50] sm:$0xff] 0.0
          %313 = vst [vmem:[#allocation2 + $0x58] sm:$0xff] 0.0
          %314 = vst [vmem:[#allocation2 + $0x60] sm:$0xff] 0.0
          %315 = vst [vmem:[#allocation2 + $0x68] sm:$0xff] 0.0
          %316 = vst [vmem:[#allocation2 + $0x70] sm:$0xff] 0.0
          %317 = vst [vmem:[#allocation2 + $0x78] sm:$0xff] 0.0
          %318 = vst [vmem:[#allocation2 + $0x80] sm:$0xff] 0.0
          %319 = vst [vmem:[#allocation2 + $0x88] sm:$0xff] 0.0
          %320 = vst [vmem:[#allocation2 + $0x90] sm:$0xff] 0.0
          %321 = vst [vmem:[#allocation2 + $0x98] sm:$0xff] 0.0
          %322 = vst [vmem:[#allocation2 + $0xa0] sm:$0xff] 0.0
          %323 = vst [vmem:[#allocation2 + $0xa8] sm:$0xff] 0.0
          %324 = vst [vmem:[#allocation2 + $0xb0] sm:$0xff] 0.0
          %325 = vst [vmem:[#allocation2 + $0xb8] sm:$0xff] 0.0
          %326 = vst [vmem:[#allocation2 + $0xc0] sm:$0xff] 0.0
          %327 = vst [vmem:[#allocation2 + $0xc8] sm:$0xff] 0.0
          %328 = vst [vmem:[#allocation2 + $0xd0] sm:$0xff] 0.0
          %329 = vst [vmem:[#allocation2 + $0xd8] sm:$0xff] 0.0
          %330 = vst [vmem:[#allocation2 + $0xe0] sm:$0xff] 0.0
          %331 = vst [vmem:[#allocation2 + $0xe8] sm:$0xff] 0.0
          %332 = vst [vmem:[#allocation2 + $0xf0] sm:$0xff] 0.0
          %333 = vst [vmem:[#allocation2 + $0xf8] sm:$0xff] 0.0
        $region44: #{tpu_custom_call.1} parent=31 // pred_fallthru
          _
        %v334 = vld [vmem:[#allocation2] sm:$0xff]
        %v335 = vld [vmem:[#allocation2 + $0x8] sm:$0xff]
        %v336 = vld [vmem:[#allocation2 + $0x10] sm:$0xff]
        %v337 = vld [vmem:[#allocation2 + $0x18] sm:$0xff]
        %v338 = vld [vmem:[#allocation2 + $0x20] sm:$0xff]
        %v339 = vld [vmem:[#allocation2 + $0x28] sm:$0xff]
        %v340 = vld [vmem:[#allocation2 + $0x30] sm:$0xff]
        %v341 = vld [vmem:[#allocation2 + $0x38] sm:$0xff]
        %v342 = vld [vmem:[#allocation2 + $0x40] sm:$0xff]
        %v343 = vld [vmem:[#allocation2 + $0x48] sm:$0xff]
        %v344 = vld [vmem:[#allocation2 + $0x50] sm:$0xff]
        %v345 = vld [vmem:[#allocation2 + $0x58] sm:$0xff]
        %v346 = vld [vmem:[#allocation2 + $0x60] sm:$0xff]
        %v347 = vld [vmem:[#allocation2 + $0x68] sm:$0xff]
        %v348 = vld [vmem:[#allocation2 + $0x70] sm:$0xff]
        %v349 = vld [vmem:[#allocation2 + $0x78] sm:$0xff]
        %v350 = vld [vmem:[#allocation2 + $0x80] sm:$0xff]
        %v351 = vld [vmem:[#allocation2 + $0x88] sm:$0xff]
        %v352 = vld [vmem:[#allocation2 + $0x90] sm:$0xff]
        %v353 = vld [vmem:[#allocation2 + $0x98] sm:$0xff]
        %v354 = vld [vmem:[#allocation2 + $0xa0] sm:$0xff]
        %v355 = vld [vmem:[#allocation2 + $0xa8] sm:$0xff]
        %v356 = vld [vmem:[#allocation2 + $0xb0] sm:$0xff]
        %v357 = vld [vmem:[#allocation2 + $0xb8] sm:$0xff]
        %v358 = vld [vmem:[#allocation2 + $0xc0] sm:$0xff]
        %v359 = vld [vmem:[#allocation2 + $0xc8] sm:$0xff]
        %v360 = vld [vmem:[#allocation2 + $0xd0] sm:$0xff]
        %v361 = vld [vmem:[#allocation2 + $0xd8] sm:$0xff]
        %v362 = vld [vmem:[#allocation2 + $0xe0] sm:$0xff]
        %v363 = vld [vmem:[#allocation2 + $0xe8] sm:$0xff]
        %v364 = vld [vmem:[#allocation2 + $0xf0] sm:$0xff]
        %v365 = vld [vmem:[#allocation2 + $0xf8] sm:$0xff]
        %v366 = vld [vmem:[%s253] sm:$0xf]
        %v367 = vld [vmem:[%s253 + $0x4] sm:$0xf]
        %v368 = vld [vmem:[%s253 + $0x8] sm:$0xf]
        %v369 = vld [vmem:[%s253 + $0xc] sm:$0xf]
        %v370 = vld [vmem:[%s253 + $0x10] sm:$0xf]
        %v371 = vld [vmem:[%s253 + $0x14] sm:$0xf]
        %v372 = vld [vmem:[%s253 + $0x18] sm:$0xf]
        %v373 = vld [vmem:[%s253 + $0x1c] sm:$0xf]
        %v374 = vld [vmem:[%s253 + $0x20] sm:$0xf]
        %v375 = vld [vmem:[%s253 + $0x24] sm:$0xf]
        %v376 = vld [vmem:[%s253 + $0x28] sm:$0xf]
        %v377 = vld [vmem:[%s253 + $0x2c] sm:$0xf]
        %v378 = vld [vmem:[%s253 + $0x30] sm:$0xf]
        %v379 = vld [vmem:[%s253 + $0x34] sm:$0xf]
        %v380 = vld [vmem:[%s253 + $0x38] sm:$0xf]
        %v381 = vld [vmem:[%s253 + $0x3c] sm:$0xf]
        %v382 = vld [vmem:[%s253 + $0x40] sm:$0xf]
        %v383 = vld [vmem:[%s253 + $0x44] sm:$0xf]
        %v384 = vld [vmem:[%s253 + $0x48] sm:$0xf]
        %v385 = vld [vmem:[%s253 + $0x4c] sm:$0xf]
        %v386 = vld [vmem:[%s253 + $0x50] sm:$0xf]
        %v387 = vld [vmem:[%s253 + $0x54] sm:$0xf]
        %v388 = vld [vmem:[%s253 + $0x58] sm:$0xf]
        %v389 = vld [vmem:[%s253 + $0x5c] sm:$0xf]
        %v390 = vld [vmem:[%s253 + $0x60] sm:$0xf]
        %v391 = vld [vmem:[%s253 + $0x64] sm:$0xf]
        %v392 = vld [vmem:[%s253 + $0x68] sm:$0xf]
        %v393 = vld [vmem:[%s253 + $0x6c] sm:$0xf]
        %v394 = vld [vmem:[%s253 + $0x70] sm:$0xf]
        %v395 = vld [vmem:[%s253 + $0x74] sm:$0xf]
        %v396 = vld [vmem:[%s253 + $0x78] sm:$0xf]
        %v397 = vld [vmem:[%s253 + $0x7c] sm:$0xf]
        %v398 = vld [vmem:[#allocation6] sm:$0xf]
        %v399 = vld [vmem:[#allocation6 + $0x4] sm:$0xf]
        %v400 = vld [vmem:[#allocation6 + $0x8] sm:$0xf]
        %v401 = vld [vmem:[#allocation6 + $0xc] sm:$0xf]
        %v402 = vld [vmem:[#allocation6 + $0x10] sm:$0xf]
        %v403 = vld [vmem:[#allocation6 + $0x14] sm:$0xf]
        %v404 = vld [vmem:[#allocation6 + $0x18] sm:$0xf]
        %v405 = vld [vmem:[#allocation6 + $0x1c] sm:$0xf]
        %v406 = vld [vmem:[#allocation6 + $0x20] sm:$0xf]
        %v407 = vld [vmem:[#allocation6 + $0x24] sm:$0xf]
        %v408 = vld [vmem:[#allocation6 + $0x28] sm:$0xf]
        %v409 = vld [vmem:[#allocation6 + $0x2c] sm:$0xf]
        %v410 = vld [vmem:[#allocation6 + $0x30] sm:$0xf]
        %v411 = vld [vmem:[#allocation6 + $0x34] sm:$0xf]
        %v412 = vld [vmem:[#allocation6 + $0x38] sm:$0xf]
        %v413 = vld [vmem:[#allocation6 + $0x3c] sm:$0xf]
        %v446 = vunpack.c.l.b16 %v366
        %v447 = vunpack.c.l.b16 %v367
        %v448 = vunpack.c.l.b16 %v368
        %v449 = vunpack.c.l.b16 %v369
        %v450 = vunpack.c.l.b16 %v370
        %v451 = vunpack.c.l.b16 %v371
        %v452 = vunpack.c.l.b16 %v372
        %v453 = vunpack.c.l.b16 %v373
        %v454 = vunpack.c.l.b16 %v374
        %v455 = vunpack.c.l.b16 %v375
        %v456 = vunpack.c.l.b16 %v376
        %v457 = vunpack.c.l.b16 %v377
        %v458 = vunpack.c.l.b16 %v378
        %v459 = vunpack.c.l.b16 %v379
        %v460 = vunpack.c.l.b16 %v380
        %v461 = vunpack.c.l.b16 %v381
        %v462 = vunpack.c.l.b16 %v382
        %v463 = vunpack.c.l.b16 %v383
        %v464 = vunpack.c.l.b16 %v384
        %v465 = vunpack.c.l.b16 %v385
        %v466 = vunpack.c.l.b16 %v386
        %v467 = vunpack.c.l.b16 %v387
        %v468 = vunpack.c.l.b16 %v388
        %v469 = vunpack.c.l.b16 %v389
        %v470 = vunpack.c.l.b16 %v390
        %v471 = vunpack.c.l.b16 %v391
        %v472 = vunpack.c.l.b16 %v392
        %v473 = vunpack.c.l.b16 %v393
        %v474 = vunpack.c.l.b16 %v394
        %v475 = vunpack.c.l.b16 %v395
        %v476 = vunpack.c.l.b16 %v396
        %v477 = vunpack.c.l.b16 %v397
        %v478 = vpack.c.b16 %v447, %v446
        %v479 = vpack.c.b16 %v449, %v448
        %v480 = vpack.c.b16 %v451, %v450
        %v481 = vpack.c.b16 %v453, %v452
        %v482 = vpack.c.b16 %v455, %v454
        %v483 = vpack.c.b16 %v457, %v456
        %v484 = vpack.c.b16 %v459, %v458
        %v485 = vpack.c.b16 %v461, %v460
        %v486 = vpack.c.b16 %v463, %v462
        %v487 = vpack.c.b16 %v465, %v464
        %v488 = vpack.c.b16 %v467, %v466
        %v489 = vpack.c.b16 %v469, %v468
        %v490 = vpack.c.b16 %v471, %v470
        %v491 = vpack.c.b16 %v473, %v472
        %v492 = vpack.c.b16 %v475, %v474
        %v493 = vpack.c.b16 %v477, %v476
        %v526 = vunpack.c.l.b16 %v398
        %v527 = vunpack.c.l.b16 %v399
        %v528 = vunpack.c.l.b16 %v400
        %v529 = vunpack.c.l.b16 %v401
        %v530 = vunpack.c.l.b16 %v402
        %v531 = vunpack.c.l.b16 %v403
        %v532 = vunpack.c.l.b16 %v404
        %v533 = vunpack.c.l.b16 %v405
        %v534 = vunpack.c.l.b16 %v406
        %v535 = vunpack.c.l.b16 %v407
        %v536 = vunpack.c.l.b16 %v408
        %v537 = vunpack.c.l.b16 %v409
        %v538 = vunpack.c.l.b16 %v410
        %v539 = vunpack.c.l.b16 %v411
        %v540 = vunpack.c.l.b16 %v412
        %v541 = vunpack.c.l.b16 %v413
        %v542 = vpack.c.b16 %v527, %v526
        %v543 = vpack.c.b16 %v529, %v528
        %v544 = vpack.c.b16 %v531, %v530
        %v545 = vpack.c.b16 %v533, %v532
        %v546 = vpack.c.b16 %v535, %v534
        %v547 = vpack.c.b16 %v537, %v536
        %v548 = vpack.c.b16 %v539, %v538
        %v549 = vpack.c.b16 %v541, %v540
        %558 = vmatprep.subr.bf16.mxu0 0
        %559 = vmatpush1.bf16.msra.mxu0 %v549
        %560 = vmatprep.subr.bf16.mxu0 0
        %561 = vmatpush1.bf16.msra.mxu0 %v548
        %562 = vmatprep.subr.bf16.mxu0 0
        %563 = vmatpush1.bf16.msra.mxu0 %v547
        %564 = vmatprep.subr.bf16.mxu0 0
        %565 = vmatpush1.bf16.msra.mxu0 %v546
        %566 = vmatprep.subr.bf16.mxu0 0
        %567 = vmatpush1.bf16.msra.mxu0 %v545
        %568 = vmatprep.subr.bf16.mxu0 0
        %569 = vmatpush1.bf16.msra.mxu0 %v544
        %570 = vmatprep.subr.bf16.mxu0 0
        %571 = vmatpush1.bf16.msra.mxu0 %v543
        %572 = vmatprep.subr.bf16.mxu0 0
        %573 = vmatpush1.bf16.msra.mxu0 %v542
        %574 = vmatprep.subr.bf16.mxu0 0
        %575 = vmatpush2.bf16.msra.mxu0 0
        %576 = vmatprep.subr.bf16.mxu0 0
        %577 = vmatpush2.bf16.msra.mxu0 0
        %578 = vmatprep.subr.bf16.mxu0 0
        %579 = vmatpush2.bf16.msra.mxu0 0
        %580 = vmatprep.subr.bf16.mxu0 0
        %581 = vmatpush2.bf16.msra.mxu0 0
        %582 = vmatprep.subr.bf16.mxu0 0
        %583 = vmatpush2.bf16.msra.mxu0 0
        %584 = vmatprep.subr.bf16.mxu0 0
        %585 = vmatpush2.bf16.msra.mxu0 0
        %586 = vmatprep.subr.bf16.mxu0 0
        %587 = vmatpush2.bf16.msra.mxu0 0
        %588 = vmatprep.subr.bf16.mxu0 0
        %589 = vmatpush2.bf16.msra.mxu0 0
        %590 = vmatprep.mubr.bf16.mxu0 0
        %591 = vmatmul.mubr.bf16.gmra.mxu0 %v478
        %v592 = vpop.f32.mrf.mxu0
        %v593 = vadd.f32 0.0, %v592
        %v594 = vpop.f32.mrf.mxu0
        %v595 = vpop.f32.mrf.mxu0
        %v596 = vadd.f32 0.0, %v595
        %v597 = vpop.f32.mrf.mxu0
        %598 = vmatprep.mubr.bf16.mxu0 0
        %599 = vmatmul.mubr.bf16.gmra.mxu0 %v479
        %v600 = vpop.f32.mrf.mxu0
        %v601 = vadd.f32 0.0, %v600
        %v602 = vpop.f32.mrf.mxu0
        %v603 = vpop.f32.mrf.mxu0
        %v604 = vadd.f32 0.0, %v603
        %v605 = vpop.f32.mrf.mxu0
        %606 = vmatprep.mubr.bf16.mxu0 0
        %607 = vmatmul.mubr.bf16.gmra.mxu0 %v480
        %v608 = vpop.f32.mrf.mxu0
        %v609 = vadd.f32 0.0, %v608
        %v610 = vpop.f32.mrf.mxu0
        %v611 = vpop.f32.mrf.mxu0
        %v612 = vadd.f32 0.0, %v611
        %v613 = vpop.f32.mrf.mxu0
        %614 = vmatprep.mubr.bf16.mxu0 0
        %615 = vmatmul.mubr.bf16.gmra.mxu0 %v481
        %v616 = vpop.f32.mrf.mxu0
        %v617 = vadd.f32 0.0, %v616
        %v618 = vpop.f32.mrf.mxu0
        %v619 = vpop.f32.mrf.mxu0
        %v620 = vadd.f32 0.0, %v619
        %v621 = vpop.f32.mrf.mxu0
        %622 = vmatprep.mubr.bf16.mxu0 0
        %623 = vmatmul.mubr.bf16.gmra.mxu0 %v482
        %v624 = vpop.f32.mrf.mxu0
        %v625 = vadd.f32 0.0, %v624
        %v626 = vpop.f32.mrf.mxu0
        %v627 = vpop.f32.mrf.mxu0
        %v628 = vadd.f32 0.0, %v627
        %v629 = vpop.f32.mrf.mxu0
        %630 = vmatprep.mubr.bf16.mxu0 0
        %631 = vmatmul.mubr.bf16.gmra.mxu0 %v483
        %v632 = vpop.f32.mrf.mxu0
        %v633 = vadd.f32 0.0, %v632
        %v634 = vpop.f32.mrf.mxu0
        %v635 = vpop.f32.mrf.mxu0
        %v636 = vadd.f32 0.0, %v635
        %v637 = vpop.f32.mrf.mxu0
        %638 = vmatprep.mubr.bf16.mxu0 0
        %639 = vmatmul.mubr.bf16.gmra.mxu0 %v484
        %v640 = vpop.f32.mrf.mxu0
        %v641 = vadd.f32 0.0, %v640
        %v642 = vpop.f32.mrf.mxu0
        %v643 = vpop.f32.mrf.mxu0
        %v644 = vadd.f32 0.0, %v643
        %v645 = vpop.f32.mrf.mxu0
        %646 = vmatprep.mubr.bf16.mxu0 0
        %647 = vmatmul.mubr.bf16.gmra.mxu0 %v485
        %v648 = vpop.f32.mrf.mxu0
        %v649 = vadd.f32 0.0, %v648
        %v650 = vpop.f32.mrf.mxu0
        %v651 = vpop.f32.mrf.mxu0
        %v652 = vadd.f32 0.0, %v651
        %v653 = vpop.f32.mrf.mxu0
        %654 = vmatprep.mubr.bf16.mxu0 0
        %655 = vmatmul.mubr.bf16.gmra.mxu0 %v486
        %v656 = vpop.f32.mrf.mxu0
        %v657 = vadd.f32 0.0, %v656
        %v658 = vpop.f32.mrf.mxu0
        %v659 = vpop.f32.mrf.mxu0
        %v660 = vadd.f32 0.0, %v659
        %v661 = vpop.f32.mrf.mxu0
        %662 = vmatprep.mubr.bf16.mxu0 0
        %663 = vmatmul.mubr.bf16.gmra.mxu0 %v487
        %v664 = vpop.f32.mrf.mxu0
        %v665 = vadd.f32 0.0, %v664
        %v666 = vpop.f32.mrf.mxu0
        %v667 = vpop.f32.mrf.mxu0
        %v668 = vadd.f32 0.0, %v667
        %v669 = vpop.f32.mrf.mxu0
        %670 = vmatprep.mubr.bf16.mxu0 0
        %671 = vmatmul.mubr.bf16.gmra.mxu0 %v488
        %v672 = vpop.f32.mrf.mxu0
        %v673 = vadd.f32 0.0, %v672
        %v674 = vpop.f32.mrf.mxu0
        %v675 = vpop.f32.mrf.mxu0
        %v676 = vadd.f32 0.0, %v675
        %v677 = vpop.f32.mrf.mxu0
        %678 = vmatprep.mubr.bf16.mxu0 0
        %679 = vmatmul.mubr.bf16.gmra.mxu0 %v489
        %v680 = vpop.f32.mrf.mxu0
        %v681 = vadd.f32 0.0, %v680
        %v682 = vpop.f32.mrf.mxu0
        %v683 = vpop.f32.mrf.mxu0
        %v684 = vadd.f32 0.0, %v683
        %v685 = vpop.f32.mrf.mxu0
        %686 = vmatprep.mubr.bf16.mxu0 0
        %687 = vmatmul.mubr.bf16.gmra.mxu0 %v490
        %v688 = vpop.f32.mrf.mxu0
        %v689 = vadd.f32 0.0, %v688
        %v690 = vpop.f32.mrf.mxu0
        %v691 = vpop.f32.mrf.mxu0
        %v692 = vadd.f32 0.0, %v691
        %v693 = vpop.f32.mrf.mxu0
        %694 = vmatprep.mubr.bf16.mxu0 0
        %695 = vmatmul.mubr.bf16.gmra.mxu0 %v491
        %v696 = vpop.f32.mrf.mxu0
        %v697 = vadd.f32 0.0, %v696
        %v698 = vpop.f32.mrf.mxu0
        %v699 = vpop.f32.mrf.mxu0
        %v700 = vadd.f32 0.0, %v699
        %v701 = vpop.f32.mrf.mxu0
        %702 = vmatprep.mubr.bf16.mxu0 0
        %703 = vmatmul.mubr.bf16.gmra.mxu0 %v492
        %v704 = vpop.f32.mrf.mxu0
        %v705 = vadd.f32 0.0, %v704
        %v706 = vpop.f32.mrf.mxu0
        %v707 = vpop.f32.mrf.mxu0
        %v708 = vadd.f32 0.0, %v707
        %v709 = vpop.f32.mrf.mxu0
        %710 = vmatprep.mubr.bf16.mxu0 0
        %711 = vmatmul.mubr.bf16.gmra.mxu0 %v493
        %v712 = vpop.f32.mrf.mxu0
        %v713 = vadd.f32 0.0, %v712
        %v714 = vpop.f32.mrf.mxu0
        %v715 = vpop.f32.mrf.mxu0
        %v716 = vadd.f32 0.0, %v715
        %v717 = vpop.f32.mrf.mxu0
        %718 = vdwg.mxu0
        %v719 = vadd.f32 %v334, %v593
        %v720 = vadd.f32 %v335, %v596
        %v721 = vadd.f32 %v336, %v601
        %v722 = vadd.f32 %v337, %v604
        %v723 = vadd.f32 %v338, %v609
        %v724 = vadd.f32 %v339, %v612
        %v725 = vadd.f32 %v340, %v617
        %v726 = vadd.f32 %v341, %v620
        %v727 = vadd.f32 %v342, %v625
        %v728 = vadd.f32 %v343, %v628
        %v729 = vadd.f32 %v344, %v633
        %v730 = vadd.f32 %v345, %v636
        %v731 = vadd.f32 %v346, %v641
        %v732 = vadd.f32 %v347, %v644
        %v733 = vadd.f32 %v348, %v649
        %v734 = vadd.f32 %v349, %v652
        %v735 = vadd.f32 %v350, %v657
        %v736 = vadd.f32 %v351, %v660
        %v737 = vadd.f32 %v352, %v665
        %v738 = vadd.f32 %v353, %v668
        %v739 = vadd.f32 %v354, %v673
        %v740 = vadd.f32 %v355, %v676
        %v741 = vadd.f32 %v356, %v681
        %v742 = vadd.f32 %v357, %v684
        %v743 = vadd.f32 %v358, %v689
        %v744 = vadd.f32 %v359, %v692
        %v745 = vadd.f32 %v360, %v697
        %v746 = vadd.f32 %v361, %v700
        %v747 = vadd.f32 %v362, %v705
        %v748 = vadd.f32 %v363, %v708
        %v749 = vadd.f32 %v364, %v713
        %v750 = vadd.f32 %v365, %v716
        %751 = vst [vmem:[#allocation2] sm:$0xff] %v719
        %752 = vst [vmem:[#allocation2 + $0x8] sm:$0xff] %v720
        %753 = vst [vmem:[#allocation2 + $0x10] sm:$0xff] %v721
        %754 = vst [vmem:[#allocation2 + $0x18] sm:$0xff] %v722
        %755 = vst [vmem:[#allocation2 + $0x20] sm:$0xff] %v723
        %756 = vst [vmem:[#allocation2 + $0x28] sm:$0xff] %v724
        %757 = vst [vmem:[#allocation2 + $0x30] sm:$0xff] %v725
        %758 = vst [vmem:[#allocation2 + $0x38] sm:$0xff] %v726
        %759 = vst [vmem:[#allocation2 + $0x40] sm:$0xff] %v727
        %760 = vst [vmem:[#allocation2 + $0x48] sm:$0xff] %v728
        %761 = vst [vmem:[#allocation2 + $0x50] sm:$0xff] %v729
        %762 = vst [vmem:[#allocation2 + $0x58] sm:$0xff] %v730
        %763 = vst [vmem:[#allocation2 + $0x60] sm:$0xff] %v731
        %764 = vst [vmem:[#allocation2 + $0x68] sm:$0xff] %v732
        %765 = vst [vmem:[#allocation2 + $0x70] sm:$0xff] %v733
        %766 = vst [vmem:[#allocation2 + $0x78] sm:$0xff] %v734
        %767 = vst [vmem:[#allocation2 + $0x80] sm:$0xff] %v735
        %768 = vst [vmem:[#allocation2 + $0x88] sm:$0xff] %v736
        %769 = vst [vmem:[#allocation2 + $0x90] sm:$0xff] %v737
        %770 = vst [vmem:[#allocation2 + $0x98] sm:$0xff] %v738
        %771 = vst [vmem:[#allocation2 + $0xa0] sm:$0xff] %v739
        %772 = vst [vmem:[#allocation2 + $0xa8] sm:$0xff] %v740
        %773 = vst [vmem:[#allocation2 + $0xb0] sm:$0xff] %v741
        %774 = vst [vmem:[#allocation2 + $0xb8] sm:$0xff] %v742
        %775 = vst [vmem:[#allocation2 + $0xc0] sm:$0xff] %v743
        %776 = vst [vmem:[#allocation2 + $0xc8] sm:$0xff] %v744
        %777 = vst [vmem:[#allocation2 + $0xd0] sm:$0xff] %v745
        %778 = vst [vmem:[#allocation2 + $0xd8] sm:$0xff] %v746
        %779 = vst [vmem:[#allocation2 + $0xe0] sm:$0xff] %v747
        %780 = vst [vmem:[#allocation2 + $0xe8] sm:$0xff] %v748
        %781 = vst [vmem:[#allocation2 + $0xf0] sm:$0xff] %v749
        %782 = vst [vmem:[#allocation2 + $0xf8] sm:$0xff] %v750
        // Predicated region
        $region45: #{tpu_custom_call.1} parent=31 // pred_check
          %p783 = pneg %p298
        $region46: #{tpu_custom_call.1} parent=31 // pred_check_branch
          %785 = sbr.rel (%p783) target = $region48
        $region47: #{tpu_custom_call.1} parent=31 // pred_region
          %v786 = vld [vmem:[#allocation2] sm:$0xff]
          %v787 = vld [vmem:[#allocation2 + $0x8] sm:$0xff]
          %v788 = vld [vmem:[#allocation2 + $0x10] sm:$0xff]
          %v789 = vld [vmem:[#allocation2 + $0x18] sm:$0xff]
          %v790 = vld [vmem:[#allocation2 + $0x20] sm:$0xff]
          %v791 = vld [vmem:[#allocation2 + $0x28] sm:$0xff]
          %v792 = vld [vmem:[#allocation2 + $0x30] sm:$0xff]
          %v793 = vld [vmem:[#allocation2 + $0x38] sm:$0xff]
          %v794 = vld [vmem:[#allocation2 + $0x40] sm:$0xff]
          %v795 = vld [vmem:[#allocation2 + $0x48] sm:$0xff]
          %v796 = vld [vmem:[#allocation2 + $0x50] sm:$0xff]
          %v797 = vld [vmem:[#allocation2 + $0x58] sm:$0xff]
          %v798 = vld [vmem:[#allocation2 + $0x60] sm:$0xff]
          %v799 = vld [vmem:[#allocation2 + $0x68] sm:$0xff]
          %v800 = vld [vmem:[#allocation2 + $0x70] sm:$0xff]
          %v801 = vld [vmem:[#allocation2 + $0x78] sm:$0xff]
          %v802 = vld [vmem:[#allocation2 + $0x80] sm:$0xff]
          %v803 = vld [vmem:[#allocation2 + $0x88] sm:$0xff]
          %v804 = vld [vmem:[#allocation2 + $0x90] sm:$0xff]
          %v805 = vld [vmem:[#allocation2 + $0x98] sm:$0xff]
          %v806 = vld [vmem:[#allocation2 + $0xa0] sm:$0xff]
          %v807 = vld [vmem:[#allocation2 + $0xa8] sm:$0xff]
          %v808 = vld [vmem:[#allocation2 + $0xb0] sm:$0xff]
          %v809 = vld [vmem:[#allocation2 + $0xb8] sm:$0xff]
          %v810 = vld [vmem:[#allocation2 + $0xc0] sm:$0xff]
          %v811 = vld [vmem:[#allocation2 + $0xc8] sm:$0xff]
          %v812 = vld [vmem:[#allocation2 + $0xd0] sm:$0xff]
          %v813 = vld [vmem:[#allocation2 + $0xd8] sm:$0xff]
          %v814 = vld [vmem:[#allocation2 + $0xe0] sm:$0xff]
          %v815 = vld [vmem:[#allocation2 + $0xe8] sm:$0xff]
          %v816 = vld [vmem:[#allocation2 + $0xf0] sm:$0xff]
          %v817 = vld [vmem:[#allocation2 + $0xf8] sm:$0xff]
          %v818 = vld [vmem:[%s294] sm:$0x1]
          %v820 = vlaneseq
          %v821 = vshrl.u32 %v820, 7
          %v822 = vsub.s32 0, %v821
          %v823 = vrot.slane %v818, %v822
          %v825 = vadd.f32 %v786, %v823
          %v826 = vadd.f32 %v787, %v823
          %v827 = vadd.f32 %v788, %v823
          %v828 = vadd.f32 %v789, %v823
          %v829 = vadd.f32 %v790, %v823
          %v830 = vadd.f32 %v791, %v823
          %v831 = vadd.f32 %v792, %v823
          %v832 = vadd.f32 %v793, %v823
          %v833 = vadd.f32 %v794, %v823
          %v834 = vadd.f32 %v795, %v823
          %v835 = vadd.f32 %v796, %v823
          %v836 = vadd.f32 %v797, %v823
          %v837 = vadd.f32 %v798, %v823
          %v838 = vadd.f32 %v799, %v823
          %v839 = vadd.f32 %v800, %v823
          %v840 = vadd.f32 %v801, %v823
          %v841 = vadd.f32 %v802, %v823
          %v842 = vadd.f32 %v803, %v823
          %v843 = vadd.f32 %v804, %v823
          %v844 = vadd.f32 %v805, %v823
          %v845 = vadd.f32 %v806, %v823
          %v846 = vadd.f32 %v807, %v823
          %v847 = vadd.f32 %v808, %v823
          %v848 = vadd.f32 %v809, %v823
          %v849 = vadd.f32 %v810, %v823
          %v850 = vadd.f32 %v811, %v823
          %v851 = vadd.f32 %v812, %v823
          %v852 = vadd.f32 %v813, %v823
          %v853 = vadd.f32 %v814, %v823
          %v854 = vadd.f32 %v815, %v823
          %v855 = vadd.f32 %v816, %v823
          %v856 = vadd.f32 %v817, %v823
          %v857 = vpack.c.bf16 %v826, %v825
          %v858 = vpack.c.bf16 %v828, %v827
          %v859 = vpack.c.bf16 %v830, %v829
          %v860 = vpack.c.bf16 %v832, %v831
          %v861 = vpack.c.bf16 %v834, %v833
          %v862 = vpack.c.bf16 %v836, %v835
          %v863 = vpack.c.bf16 %v838, %v837
          %v864 = vpack.c.bf16 %v840, %v839
          %v865 = vpack.c.bf16 %v842, %v841
          %v866 = vpack.c.bf16 %v844, %v843
          %v867 = vpack.c.bf16 %v846, %v845
          %v868 = vpack.c.bf16 %v848, %v847
          %v869 = vpack.c.bf16 %v850, %v849
          %v870 = vpack.c.bf16 %v852, %v851
          %v871 = vpack.c.bf16 %v854, %v853
          %v872 = vpack.c.bf16 %v856, %v855
          %v889 = vunpack.c.l.b16 %v857
          %v890 = vunpack.c.h.b16 %v857
          %v891 = vunpack.c.l.b16 %v858
          %v892 = vunpack.c.h.b16 %v858
          %v893 = vunpack.c.l.b16 %v859
          %v894 = vunpack.c.h.b16 %v859
          %v895 = vunpack.c.l.b16 %v860
          %v896 = vunpack.c.h.b16 %v860
          %v897 = vunpack.c.l.b16 %v861
          %v898 = vunpack.c.h.b16 %v861
          %v899 = vunpack.c.l.b16 %v862
          %v900 = vunpack.c.h.b16 %v862
          %v901 = vunpack.c.l.b16 %v863
          %v902 = vunpack.c.h.b16 %v863
          %v903 = vunpack.c.l.b16 %v864
          %v904 = vunpack.c.h.b16 %v864
          %v905 = vunpack.c.l.b16 %v865
          %v906 = vunpack.c.h.b16 %v865
          %v907 = vunpack.c.l.b16 %v866
          %v908 = vunpack.c.h.b16 %v866
          %v909 = vunpack.c.l.b16 %v867
          %v910 = vunpack.c.h.b16 %v867
          %v911 = vunpack.c.l.b16 %v868
          %v912 = vunpack.c.h.b16 %v868
          %v913 = vunpack.c.l.b16 %v869
          %v914 = vunpack.c.h.b16 %v869
          %v915 = vunpack.c.l.b16 %v870
          %v916 = vunpack.c.h.b16 %v870
          %v917 = vunpack.c.l.b16 %v871
          %v918 = vunpack.c.h.b16 %v871
          %v919 = vunpack.c.l.b16 %v872
          %v920 = vunpack.c.h.b16 %v872
          %v921 = vpack.c.b16 %v889, %v889
          %v922 = vpack.c.b16 %v890, %v890
          %v923 = vpack.c.b16 %v891, %v891
          %v924 = vpack.c.b16 %v892, %v892
          %v925 = vpack.c.b16 %v893, %v893
          %v926 = vpack.c.b16 %v894, %v894
          %v927 = vpack.c.b16 %v895, %v895
          %v928 = vpack.c.b16 %v896, %v896
          %v929 = vpack.c.b16 %v897, %v897
          %v930 = vpack.c.b16 %v898, %v898
          %v931 = vpack.c.b16 %v899, %v899
          %v932 = vpack.c.b16 %v900, %v900
          %v933 = vpack.c.b16 %v901, %v901
          %v934 = vpack.c.b16 %v902, %v902
          %v935 = vpack.c.b16 %v903, %v903
          %v936 = vpack.c.b16 %v904, %v904
          %v937 = vpack.c.b16 %v905, %v905
          %v938 = vpack.c.b16 %v906, %v906
          %v939 = vpack.c.b16 %v907, %v907
          %v940 = vpack.c.b16 %v908, %v908
          %v941 = vpack.c.b16 %v909, %v909
          %v942 = vpack.c.b16 %v910, %v910
          %v943 = vpack.c.b16 %v911, %v911
          %v944 = vpack.c.b16 %v912, %v912
          %v945 = vpack.c.b16 %v913, %v913
          %v946 = vpack.c.b16 %v914, %v914
          %v947 = vpack.c.b16 %v915, %v915
          %v948 = vpack.c.b16 %v916, %v916
          %v949 = vpack.c.b16 %v917, %v917
          %v950 = vpack.c.b16 %v918, %v918
          %v951 = vpack.c.b16 %v919, %v919
          %v952 = vpack.c.b16 %v920, %v920
          %985 = vst [vmem:[%s282] sm:$0xf] %v921
          %986 = vst [vmem:[%s282 + $0x4] sm:$0xf] %v922
          %987 = vst [vmem:[%s282 + $0x8] sm:$0xf] %v923
          %988 = vst [vmem:[%s282 + $0xc] sm:$0xf] %v924
          %989 = vst [vmem:[%s282 + $0x10] sm:$0xf] %v925
          %990 = vst [vmem:[%s282 + $0x14] sm:$0xf] %v926
          %991 = vst [vmem:[%s282 + $0x18] sm:$0xf] %v927
          %992 = vst [vmem:[%s282 + $0x1c] sm:$0xf] %v928
          %993 = vst [vmem:[%s282 + $0x20] sm:$0xf] %v929
          %994 = vst [vmem:[%s282 + $0x24] sm:$0xf] %v930
          %995 = vst [vmem:[%s282 + $0x28] sm:$0xf] %v931
          %996 = vst [vmem:[%s282 + $0x2c] sm:$0xf] %v932
          %997 = vst [vmem:[%s282 + $0x30] sm:$0xf] %v933
          %998 = vst [vmem:[%s282 + $0x34] sm:$0xf] %v934
          %999 = vst [vmem:[%s282 + $0x38] sm:$0xf] %v935
          %1000 = vst [vmem:[%s282 + $0x3c] sm:$0xf] %v936
          %1001 = vst [vmem:[%s282 + $0x40] sm:$0xf] %v937
          %1002 = vst [vmem:[%s282 + $0x44] sm:$0xf] %v938
          %1003 = vst [vmem:[%s282 + $0x48] sm:$0xf] %v939
          %1004 = vst [vmem:[%s282 + $0x4c] sm:$0xf] %v940
          %1005 = vst [vmem:[%s282 + $0x50] sm:$0xf] %v941
          %1006 = vst [vmem:[%s282 + $0x54] sm:$0xf] %v942
          %1007 = vst [vmem:[%s282 + $0x58] sm:$0xf] %v943
          %1008 = vst [vmem:[%s282 + $0x5c] sm:$0xf] %v944
          %1009 = vst [vmem:[%s282 + $0x60] sm:$0xf] %v945
          %1010 = vst [vmem:[%s282 + $0x64] sm:$0xf] %v946
          %1011 = vst [vmem:[%s282 + $0x68] sm:$0xf] %v947
          %1012 = vst [vmem:[%s282 + $0x6c] sm:$0xf] %v948
          %1013 = vst [vmem:[%s282 + $0x70] sm:$0xf] %v949
          %1014 = vst [vmem:[%s282 + $0x74] sm:$0xf] %v950
          %1015 = vst [vmem:[%s282 + $0x78] sm:$0xf] %v951
          %1016 = vst [vmem:[%s282 + $0x7c] sm:$0xf] %v952
          %vm1017 = vcmp.ge.f32.partialorder %v825, 0.0
          %vm1018 = vcmp.ge.f32.partialorder %v826, 0.0
          %vm1019 = vcmp.ge.f32.partialorder %v827, 0.0
          %vm1020 = vcmp.ge.f32.partialorder %v828, 0.0
          %vm1021 = vcmp.ge.f32.partialorder %v829, 0.0
          %vm1022 = vcmp.ge.f32.partialorder %v830, 0.0
          %vm1023 = vcmp.ge.f32.partialorder %v831, 0.0
          %vm1024 = vcmp.ge.f32.partialorder %v832, 0.0
          %vm1025 = vcmp.ge.f32.partialorder %v833, 0.0
          %vm1026 = vcmp.ge.f32.partialorder %v834, 0.0
          %vm1027 = vcmp.ge.f32.partialorder %v835, 0.0
          %vm1028 = vcmp.ge.f32.partialorder %v836, 0.0
          %vm1029 = vcmp.ge.f32.partialorder %v837, 0.0
          %vm1030 = vcmp.ge.f32.partialorder %v838, 0.0
          %vm1031 = vcmp.ge.f32.partialorder %v839, 0.0
          %vm1032 = vcmp.ge.f32.partialorder %v840, 0.0
          %vm1033 = vcmp.ge.f32.partialorder %v841, 0.0
          %vm1034 = vcmp.ge.f32.partialorder %v842, 0.0
          %vm1035 = vcmp.ge.f32.partialorder %v843, 0.0
          %vm1036 = vcmp.ge.f32.partialorder %v844, 0.0
          %vm1037 = vcmp.ge.f32.partialorder %v845, 0.0
          %vm1038 = vcmp.ge.f32.partialorder %v846, 0.0
          %vm1039 = vcmp.ge.f32.partialorder %v847, 0.0
          %vm1040 = vcmp.ge.f32.partialorder %v848, 0.0
          %vm1041 = vcmp.ge.f32.partialorder %v849, 0.0
          %vm1042 = vcmp.ge.f32.partialorder %v850, 0.0
          %vm1043 = vcmp.ge.f32.partialorder %v851, 0.0
          %vm1044 = vcmp.ge.f32.partialorder %v852, 0.0
          %vm1045 = vcmp.ge.f32.partialorder %v853, 0.0
          %vm1046 = vcmp.ge.f32.partialorder %v854, 0.0
          %vm1047 = vcmp.ge.f32.partialorder %v855, 0.0
          %vm1048 = vcmp.ge.f32.partialorder %v856, 0.0
          %v1049 = vmul.f32 %v825, 0.2
          %v1050 = vmul.f32 %v826, 0.2
          %v1051 = vmul.f32 %v827, 0.2
          %v1052 = vmul.f32 %v828, 0.2
          %v1053 = vmul.f32 %v829, 0.2
          %v1054 = vmul.f32 %v830, 0.2
          %v1055 = vmul.f32 %v831, 0.2
          %v1056 = vmul.f32 %v832, 0.2
          %v1057 = vmul.f32 %v833, 0.2
          %v1058 = vmul.f32 %v834, 0.2
          %v1059 = vmul.f32 %v835, 0.2
          %v1060 = vmul.f32 %v836, 0.2
          %v1061 = vmul.f32 %v837, 0.2
          %v1062 = vmul.f32 %v838, 0.2
          %v1063 = vmul.f32 %v839, 0.2
          %v1064 = vmul.f32 %v840, 0.2
          %v1065 = vmul.f32 %v841, 0.2
          %v1066 = vmul.f32 %v842, 0.2
          %v1067 = vmul.f32 %v843, 0.2
          %v1068 = vmul.f32 %v844, 0.2
          %v1069 = vmul.f32 %v845, 0.2
          %v1070 = vmul.f32 %v846, 0.2
          %v1071 = vmul.f32 %v847, 0.2
          %v1072 = vmul.f32 %v848, 0.2
          %v1073 = vmul.f32 %v849, 0.2
          %v1074 = vmul.f32 %v850, 0.2
          %v1075 = vmul.f32 %v851, 0.2
          %v1076 = vmul.f32 %v852, 0.2
          %v1077 = vmul.f32 %v853, 0.2
          %v1078 = vmul.f32 %v854, 0.2
          %v1079 = vmul.f32 %v855, 0.2
          %v1080 = vmul.f32 %v856, 0.2
          %v1081 = vsel %vm1017, %v825, %v1049
          %v1082 = vsel %vm1018, %v826, %v1050
          %v1083 = vsel %vm1019, %v827, %v1051
          %v1084 = vsel %vm1020, %v828, %v1052
          %v1085 = vsel %vm1021, %v829, %v1053
          %v1086 = vsel %vm1022, %v830, %v1054
          %v1087 = vsel %vm1023, %v831, %v1055
          %v1088 = vsel %vm1024, %v832, %v1056
          %v1089 = vsel %vm1025, %v833, %v1057
          %v1090 = vsel %vm1026, %v834, %v1058
          %v1091 = vsel %vm1027, %v835, %v1059
          %v1092 = vsel %vm1028, %v836, %v1060
          %v1093 = vsel %vm1029, %v837, %v1061
          %v1094 = vsel %vm1030, %v838, %v1062
          %v1095 = vsel %vm1031, %v839, %v1063
          %v1096 = vsel %vm1032, %v840, %v1064
          %v1097 = vsel %vm1033, %v841, %v1065
          %v1098 = vsel %vm1034, %v842, %v1066
          %v1099 = vsel %vm1035, %v843, %v1067
          %v1100 = vsel %vm1036, %v844, %v1068
          %v1101 = vsel %vm1037, %v845, %v1069
          %v1102 = vsel %vm1038, %v846, %v1070
          %v1103 = vsel %vm1039, %v847, %v1071
          %v1104 = vsel %vm1040, %v848, %v1072
          %v1105 = vsel %vm1041, %v849, %v1073
          %v1106 = vsel %vm1042, %v850, %v1074
          %v1107 = vsel %vm1043, %v851, %v1075
          %v1108 = vsel %vm1044, %v852, %v1076
          %v1109 = vsel %vm1045, %v853, %v1077
          %v1110 = vsel %vm1046, %v854, %v1078
          %v1111 = vsel %vm1047, %v855, %v1079
          %v1112 = vsel %vm1048, %v856, %v1080
          %v1113 = vpack.c.bf16 %v1082, %v1081
          %v1114 = vpack.c.bf16 %v1084, %v1083
          %v1115 = vpack.c.bf16 %v1086, %v1085
          %v1116 = vpack.c.bf16 %v1088, %v1087
          %v1117 = vpack.c.bf16 %v1090, %v1089
          %v1118 = vpack.c.bf16 %v1092, %v1091
          %v1119 = vpack.c.bf16 %v1094, %v1093
          %v1120 = vpack.c.bf16 %v1096, %v1095
          %v1121 = vpack.c.bf16 %v1098, %v1097
          %v1122 = vpack.c.bf16 %v1100, %v1099
          %v1123 = vpack.c.bf16 %v1102, %v1101
          %v1124 = vpack.c.bf16 %v1104, %v1103
          %v1125 = vpack.c.bf16 %v1106, %v1105
          %v1126 = vpack.c.bf16 %v1108, %v1107
          %v1127 = vpack.c.bf16 %v1110, %v1109
          %v1128 = vpack.c.bf16 %v1112, %v1111
          %v1145 = vunpack.c.l.b16 %v1113
          %v1146 = vunpack.c.h.b16 %v1113
          %v1147 = vunpack.c.l.b16 %v1114
          %v1148 = vunpack.c.h.b16 %v1114
          %v1149 = vunpack.c.l.b16 %v1115
          %v1150 = vunpack.c.h.b16 %v1115
          %v1151 = vunpack.c.l.b16 %v1116
          %v1152 = vunpack.c.h.b16 %v1116
          %v1153 = vunpack.c.l.b16 %v1117
          %v1154 = vunpack.c.h.b16 %v1117
          %v1155 = vunpack.c.l.b16 %v1118
          %v1156 = vunpack.c.h.b16 %v1118
          %v1157 = vunpack.c.l.b16 %v1119
          %v1158 = vunpack.c.h.b16 %v1119
          %v1159 = vunpack.c.l.b16 %v1120
          %v1160 = vunpack.c.h.b16 %v1120
          %v1161 = vunpack.c.l.b16 %v1121
          %v1162 = vunpack.c.h.b16 %v1121
          %v1163 = vunpack.c.l.b16 %v1122
          %v1164 = vunpack.c.h.b16 %v1122
          %v1165 = vunpack.c.l.b16 %v1123
          %v1166 = vunpack.c.h.b16 %v1123
          %v1167 = vunpack.c.l.b16 %v1124
          %v1168 = vunpack.c.h.b16 %v1124
          %v1169 = vunpack.c.l.b16 %v1125
          %v1170 = vunpack.c.h.b16 %v1125
          %v1171 = vunpack.c.l.b16 %v1126
          %v1172 = vunpack.c.h.b16 %v1126
          %v1173 = vunpack.c.l.b16 %v1127
          %v1174 = vunpack.c.h.b16 %v1127
          %v1175 = vunpack.c.l.b16 %v1128
          %v1176 = vunpack.c.h.b16 %v1128
          %v1177 = vpack.c.b16 %v1145, %v1145
          %v1178 = vpack.c.b16 %v1146, %v1146
          %v1179 = vpack.c.b16 %v1147, %v1147
          %v1180 = vpack.c.b16 %v1148, %v1148
          %v1181 = vpack.c.b16 %v1149, %v1149
          %v1182 = vpack.c.b16 %v1150, %v1150
          %v1183 = vpack.c.b16 %v1151, %v1151
          %v1184 = vpack.c.b16 %v1152, %v1152
          %v1185 = vpack.c.b16 %v1153, %v1153
          %v1186 = vpack.c.b16 %v1154, %v1154
          %v1187 = vpack.c.b16 %v1155, %v1155
          %v1188 = vpack.c.b16 %v1156, %v1156
          %v1189 = vpack.c.b16 %v1157, %v1157
          %v1190 = vpack.c.b16 %v1158, %v1158
          %v1191 = vpack.c.b16 %v1159, %v1159
          %v1192 = vpack.c.b16 %v1160, %v1160
          %v1193 = vpack.c.b16 %v1161, %v1161
          %v1194 = vpack.c.b16 %v1162, %v1162
          %v1195 = vpack.c.b16 %v1163, %v1163
          %v1196 = vpack.c.b16 %v1164, %v1164
          %v1197 = vpack.c.b16 %v1165, %v1165
          %v1198 = vpack.c.b16 %v1166, %v1166
          %v1199 = vpack.c.b16 %v1167, %v1167
          %v1200 = vpack.c.b16 %v1168, %v1168
          %v1201 = vpack.c.b16 %v1169, %v1169
          %v1202 = vpack.c.b16 %v1170, %v1170
          %v1203 = vpack.c.b16 %v1171, %v1171
          %v1204 = vpack.c.b16 %v1172, %v1172
          %v1205 = vpack.c.b16 %v1173, %v1173
          %v1206 = vpack.c.b16 %v1174, %v1174
          %v1207 = vpack.c.b16 %v1175, %v1175
          %v1208 = vpack.c.b16 %v1176, %v1176
          %1241 = vst [vmem:[%s289] sm:$0xf] %v1177
          %1242 = vst [vmem:[%s289 + $0x4] sm:$0xf] %v1178
          %1243 = vst [vmem:[%s289 + $0x8] sm:$0xf] %v1179
          %1244 = vst [vmem:[%s289 + $0xc] sm:$0xf] %v1180
          %1245 = vst [vmem:[%s289 + $0x10] sm:$0xf] %v1181
          %1246 = vst [vmem:[%s289 + $0x14] sm:$0xf] %v1182
          %1247 = vst [vmem:[%s289 + $0x18] sm:$0xf] %v1183
          %1248 = vst [vmem:[%s289 + $0x1c] sm:$0xf] %v1184
          %1249 = vst [vmem:[%s289 + $0x20] sm:$0xf] %v1185
          %1250 = vst [vmem:[%s289 + $0x24] sm:$0xf] %v1186
          %1251 = vst [vmem:[%s289 + $0x28] sm:$0xf] %v1187
          %1252 = vst [vmem:[%s289 + $0x2c] sm:$0xf] %v1188
          %1253 = vst [vmem:[%s289 + $0x30] sm:$0xf] %v1189
          %1254 = vst [vmem:[%s289 + $0x34] sm:$0xf] %v1190
          %1255 = vst [vmem:[%s289 + $0x38] sm:$0xf] %v1191
          %1256 = vst [vmem:[%s289 + $0x3c] sm:$0xf] %v1192
          %1257 = vst [vmem:[%s289 + $0x40] sm:$0xf] %v1193
          %1258 = vst [vmem:[%s289 + $0x44] sm:$0xf] %v1194
          %1259 = vst [vmem:[%s289 + $0x48] sm:$0xf] %v1195
          %1260 = vst [vmem:[%s289 + $0x4c] sm:$0xf] %v1196
          %1261 = vst [vmem:[%s289 + $0x50] sm:$0xf] %v1197
          %1262 = vst [vmem:[%s289 + $0x54] sm:$0xf] %v1198
          %1263 = vst [vmem:[%s289 + $0x58] sm:$0xf] %v1199
          %1264 = vst [vmem:[%s289 + $0x5c] sm:$0xf] %v1200
          %1265 = vst [vmem:[%s289 + $0x60] sm:$0xf] %v1201
          %1266 = vst [vmem:[%s289 + $0x64] sm:$0xf] %v1202
          %1267 = vst [vmem:[%s289 + $0x68] sm:$0xf] %v1203
          %1268 = vst [vmem:[%s289 + $0x6c] sm:$0xf] %v1204
          %1269 = vst [vmem:[%s289 + $0x70] sm:$0xf] %v1205
          %1270 = vst [vmem:[%s289 + $0x74] sm:$0xf] %v1206
          %1271 = vst [vmem:[%s289 + $0x78] sm:$0xf] %v1207
          %1272 = vst [vmem:[%s289 + $0x7c] sm:$0xf] %v1208
        $region48: #{tpu_custom_call.1} parent=31 // pred_fallthru
          _
        %s1273 = sand.u32 %s137, 1
        %s1274 = scalar_lea.sflag [#allocation5], %s1273
        %s1275 = sand.u32 %s137, 1
        %s1276 = smul.addr %s1275, 128
        %s1277 = scalar_lea.vmem [#allocation8], %s1276
        %s1278 = sand.u32 %s165, 1
        %s1279 = scalar_lea.sflag [#allocation10], %s1278
        %s1280 = sand.u32 %s165, 1
        %s1281 = smul.addr %s1280, 128
        %s1282 = scalar_lea.vmem [#allocation9], %s1281
        // Predicated region
        $region49: #{tpu_custom_call.1} parent=31 // pred_check
          %p1283 = pneg %p147
        $region50: #{tpu_custom_call.1} parent=31 // pred_check_branch
          %1285 = sbr.rel (%p1283) target = $region52
        $region51: #{tpu_custom_call.1} parent=31 // pred_region
          %s1286 = smul.u32 32, %s31
          %s1288 = ssub.s32 2048, 2048
          %1289 = vsyncadd %s1274, %s1288
          %s1290 = sadd.s32 %s32, %s1286
          %s1291 = smul.addr %s1290, 64
          %s1292 = scalar_lea.hbm %s3, %s1291
          %s1293 = sshll.u32 %s1277, 4
          %s1294 = int_to_ptr.vmem [resolvable:$true] %s1293
          %1299 = dma.vmem_to_hbm [thread:$0]  %s1294, 2048, %s1292, %s1274, 64, 64, 4
        $region52: #{tpu_custom_call.1} parent=31 // pred_fallthru
          _
        // Predicated region
        $region53: #{tpu_custom_call.1} parent=31 // pred_check
          %p1300 = pneg %p175
        $region54: #{tpu_custom_call.1} parent=31 // pred_check_branch
          %1302 = sbr.rel (%p1300) target = $region56
        $region55: #{tpu_custom_call.1} parent=31 // pred_region
          %s1303 = smul.u32 32, %s31
          %s1305 = ssub.s32 2048, 2048
          %1306 = vsyncadd %s1279, %s1305
          %s1307 = sadd.s32 %s32, %s1303
          %s1308 = smul.addr %s1307, 64
          %s1309 = scalar_lea.hbm %s4, %s1308
          %s1310 = sshll.u32 %s1282, 4
          %s1311 = int_to_ptr.vmem [resolvable:$true] %s1310
          %1316 = dma.vmem_to_hbm [thread:$0]  %s1311, 2048, %s1309, %s1279, 64, 64, 4
        $region56: #{tpu_custom_call.1} parent=31 // pred_fallthru
          _
      $region32: #{tpu_custom_call.1} parent=5 // pred_fallthru
        _
      %p1317 = scmp.le.s32.totalorder 2, %s21
      // Predicated region
      $region57: #{tpu_custom_call.1} parent=5 // pred_check
        %p1318 = pneg %p1317
      $region58: #{tpu_custom_call.1} parent=5 // pred_check_branch
        %1320 = sbr.rel (%p1318) target = $region60
      $region59: #{tpu_custom_call.1} parent=5 // pred_region
        %s1321 = ssub.s32 %s21, 2
        // Predicated region
        $region61: #{tpu_custom_call.1} parent=59 // pred_check
          %p1322 = pneg %p153
        $region62: #{tpu_custom_call.1} parent=59 // pred_check_branch
          %1324 = sbr.rel (%p1322) target = $region64
        $region63: #{tpu_custom_call.1} parent=59 // pred_region
          %s1325 = sand.u32 %s138, 1
          %s1326 = scalar_lea.sflag [#allocation5], %s1325
          %s1327 = sand.u32 %s138, 1
          %s1328 = smul.addr %s1327, 128
          %s1329 = scalar_lea.vmem [#allocation8], %s1328
          %1330 = dma.done %s1326, 2048
        $region64: #{tpu_custom_call.1} parent=59 // pred_fallthru
          _
        // Predicated region
        $region65: #{tpu_custom_call.1} parent=59 // pred_check
          %p1331 = pneg %p181
        $region66: #{tpu_custom_call.1} parent=59 // pred_check_branch
          %1333 = sbr.rel (%p1331) target = $region68
        $region67: #{tpu_custom_call.1} parent=59 // pred_region
          %s1334 = sand.u32 %s166, 1
          %s1335 = scalar_lea.sflag [#allocation10], %s1334
          %s1336 = sand.u32 %s166, 1
          %s1337 = smul.addr %s1336, 128
          %s1338 = scalar_lea.vmem [#allocation9], %s1337
          %1339 = dma.done %s1335, 2048
        $region68: #{tpu_custom_call.1} parent=59 // pred_fallthru
          _
      $region60: #{tpu_custom_call.1} parent=5 // pred_fallthru
        _
    $region6: #{tpu_custom_call.1} parent=1 // loop_footer
      %s25 = sadd.s32 1, %s21
    $region7: #{tpu_custom_call.1} parent=1 // loop_footer_branch
      %20 = sbr.rel target = $region3
    $region8: #{tpu_custom_call.1} parent=1 // loop_exit
      _
    %1340 = vsyncpa [#allocation4], 1
    %s1341 = scalar_lea.sflag [#allocation4], 1
    %1342 = vsyncpa %s1341, 1
    %1343 = vsyncpa [#allocation7], 1
    %1344 = vsyncpa [#allocation5], 1
    %s1345 = scalar_lea.sflag [#allocation5], 1
    %1346 = vsyncpa %s1345, 1
    %1347 = vsyncpa [#allocation10], 1
    %s1348 = scalar_lea.sflag [#allocation10], 1
    %1349 = vsyncpa %s1348, 1

</llo_original>
